<compile_context>
chip_gen: v7x
topology: tpu7x:2x2x1
jax: 0.10.0
libtpu: 0.0.40
codegen_flags: <defaults>
</compile_context>

<pallas_src>
import functools

import jax
import jax.numpy as jnp
from jax.experimental import pallas as pl
from jax.experimental.pallas import tpu as pltpu

_LANE = 128
_BF16_SUBLANE = 16


def _round_up(v, m):
    return (v + m - 1) // m * m


def _pick_nb(n, img_bytes, target_bytes):
    """Images per grid step: largest block under the byte target that keeps a
    >= 2-step grid, preferring an even (v7x 2-TC balance) and >= 4-step grid."""
    if n <= 1:
        return 1
    fitting = [d for d in range(1, n + 1)
               if n % d == 0 and n // d >= 2 and d * img_bytes <= target_bytes]
    if not fitting:
        return 1
    return max(fitting, key=lambda d: ((n // d) % 2 == 0, (n // d) >= 4, d))


def _se_cs_kernel(x_ref, cwrep_ref, cb_ref, w1t_ref, b1_ref, w2t_ref, b2_ref,
                  o_ref, *, hw_true):
    x = x_ref[...].astype(jnp.float32)              # (Nb, HWp, C) bf16 -> f32
    nb, hwp, c_dim = x.shape
    rep = cwrep_ref.shape[-1]

    # ---- spatial SE gate on the MXU ---------------------------------------
    # cw_rep holds the 1x1-conv weight column replicated across `rep` lanes,
    # so every lane of the matmul result already carries the per-pixel logit
    # (no lane-axis reduce, no later lane broadcast).
    x2 = x.reshape(nb * hwp, c_dim)
    s = jnp.dot(x2, cwrep_ref[...], preferred_element_type=jnp.float32)
    s = jax.nn.sigmoid(s + cb_ref[0]).reshape(nb, hwp, rep)

    # ---- channel SE gate: GAP (sum / true HW, padding-safe) + tiny MLP -----
    gap = jnp.sum(x, axis=1) * (1.0 / hw_true)                       # (Nb, C)
    h = jnp.dot(gap, w1t_ref[...], preferred_element_type=jnp.float32) + b1_ref[...]
    h = jnp.maximum(h, 0.0)                                          # (Nb, Cr)
    cg = jnp.dot(h, w2t_ref[...], preferred_element_type=jnp.float32) + b2_ref[...]
    cg = jax.nn.sigmoid(cg)                                          # (Nb, C)

    # ---- x*s + x*c == x*(s + c); s lane-replicated, c broadcasts over HW ---
    if c_dim == rep:
        s_full = s
    else:  # C is a multiple of 128: replicate the lane-broadcast vreg tiles
        s_full = jnp.tile(s, (1, 1, c_dim // rep))
    o_ref[...] = (x * (s_full + cg[:, None, :])).astype(o_ref.dtype)


def seq_ex_block_cs_nhwc(x_nhwc, conv_w, conv_b, lin1_w, lin1_b, lin2_w, lin2_b,
                         *, target_block_bytes=4 * 1024 * 1024):
    """Fused scSE gating block, channels-last.

    x_nhwc: (N, H, W, C); stored/returned as bfloat16, math in f32.
    Params follow the PyTorch shapes: conv_w (1, C, 1, 1), conv_b (1,),
    lin1_w (C//r, C), lin1_b (C//r,), lin2_w (C, C//r), lin2_b (C,).
    """
    N, H, W, C = x_nhwc.shape
    HW = H * W
    Cr = lin1_w.shape[0]
    rep = _LANE if C % _LANE == 0 else C        # lane-replication width

    # bf16 activation storage; channels stay on the lane axis (no transpose).
    x3 = x_nhwc.reshape(N, HW, C).astype(jnp.bfloat16)

    # Pad HW to the bf16 sublane tile so (HW, C) slabs are not sublane-masked
    # (HW=49 -> 64, 196 -> 208, ...). GAP divides by the true HW; padded rows
    # are zero so they do not perturb the channel gate.
    HWp = _round_up(HW, _BF16_SUBLANE)
    if HWp != HW:
        x3 = jnp.pad(x3, ((0, 0), (0, HWp - HW), (0, 0)))

    cw_rep = jnp.broadcast_to(conv_w.reshape(C, 1).astype(jnp.float32), (C, rep))
    cb = conv_b.reshape(1).astype(jnp.float32)           # scalar bias -> SMEM
    w1t = lin1_w.T.astype(jnp.float32)                   # (C, Cr) pre-transposed
    b1 = lin1_b.reshape(1, Cr).astype(jnp.float32)       # lane-dense rows
    w2t = lin2_w.T.astype(jnp.float32)                   # (Cr, C)
    b2 = lin2_b.reshape(1, C).astype(jnp.float32)

    img_bytes = HWp * C * 2                               # bf16
    Nb = _pick_nb(N, img_bytes, target_block_bytes)
    grid = (N // Nb,)
    # TODO(synk): for N == 1 (inference) split HW with a two-phase channel
    # gate so v7x's second TensorCore is not idle; grid == (1,) has no overlap.

    # Explicit VMEM budget (no artificial floor; 64 MiB cap for v7x):
    # double-buffered bf16 in/out blocks + parameter blocks + the f32
    # upcast/result intermediates the compiler may materialize + headroom.
    block_elems = Nb * HWp * C
    io_bytes = block_elems * 2
    param_bytes = (C * rep + C * Cr + Cr * C + Cr + 2 * C) * 4
    f32_tmp_bytes = 2 * block_elems * 4

    def _run(single_buffer_params):
        if single_buffer_params:
            def const(shape):
                zeros = (0,) * len(shape)
                return pl.BlockSpec(shape, lambda n: zeros,
                                    pipeline_mode=pl.Buffered(1))
            n_param_bufs = 1
        else:
            def const(shape):
                zeros = (0,) * len(shape)
                return pl.BlockSpec(shape, lambda n: zeros)
            n_param_bufs = 2

        vmem_limit = int(min(
            64 * 1024 * 1024,
            4 * io_bytes + n_param_bufs * param_bytes + f32_tmp_bytes
            + 8 * 1024 * 1024))

        return pl.pallas_call(
            functools.partial(_se_cs_kernel, hw_true=float(HW)),
            out_shape=jax.ShapeDtypeStruct((N, HWp, C), jnp.bfloat16),
            grid_spec=pltpu.PrefetchScalarGridSpec(
                num_scalar_prefetch=0,
                grid=grid,
                in_specs=[
                    pl.BlockSpec((Nb, HWp, C), lambda n: (n, 0, 0)),     # x block
                    const((C, rep)),                                     # conv w, lane-replicated
                    pl.BlockSpec(memory_space=pltpu.MemorySpace.SMEM),   # conv bias scalar
                    const((C, Cr)),                                      # W1^T
                    const((1, Cr)),                                      # b1
                    const((Cr, C)),                                      # W2^T
                    const((1, C)),                                       # b2
                ],
                out_specs=pl.BlockSpec((Nb, HWp, C), lambda n: (n, 0, 0)),
            ),
            compiler_params=pltpu.CompilerParams(
                dimension_semantics=("parallel",),
                vmem_limit_bytes=vmem_limit,
            ),
            input_output_aliases={0: 0},     # out reuses x's HBM buffer
        )(x3, cw_rep, cb, w1t, b1, w2t, b2)

    try:
        out = _run(single_buffer_params=True)
    except Exception:
        # jax versions without BlockSpec(pipeline_mode=pl.Buffered(1)) support:
        # fall back to default double-buffered parameter blocks.
        out = _run(single_buffer_params=False)

    if HWp != HW:
        out = out[:, :HW, :]
    return out.reshape(N, H, W, C)


def _reference_nchw(x, conv_w, conv_b, lin1_w, lin1_b, lin2_w, lin2_b):
    """Pure-JAX reference with PyTorch NCHW semantics."""
    N, C, H, W = x.shape
    ss_logit = jnp.einsum('nchw,c->nhw', x, conv_w.reshape(C)) + conv_b[0]
    ss = x * jax.nn.sigmoid(ss_logit)[:, None, :, :]
    gap = x.reshape(N, C, -1).mean(-1)
    h = jnp.maximum(gap @ lin1_w.T + lin1_b, 0.0)
    cg = jax.nn.sigmoid(h @ lin2_w.T + lin2_b)
    return ss + x * cg[:, :, None, None]


if __name__ == "__main__":
    key = jax.random.PRNGKey(0)
    N, C, H, W, r = 2, 128, 8, 8, 8     # lane-aligned channels, small spatial
    Cr = C // r

    keys = jax.random.split(key, 7)
    x_nchw = jax.random.normal(keys[0], (N, C, H, W), dtype=jnp.float32)
    conv_w = jax.random.normal(keys[1], (1, C, 1, 1), dtype=jnp.float32) * 0.1
    conv_b = jax.random.normal(keys[2], (1,), dtype=jnp.float32) * 0.1
    lin1_w = jax.random.normal(keys[3], (Cr, C), dtype=jnp.float32) * 0.1
    lin1_b = jax.random.normal(keys[4], (Cr,), dtype=jnp.float32) * 0.1
    lin2_w = jax.random.normal(keys[5], (C, Cr), dtype=jnp.float32) * 0.1
    lin2_b = jax.random.normal(keys[6], (C,), dtype=jnp.float32) * 0.1

    # The kernel API is channels-last end to end; this one-off transpose exists
    # only so the demo can compare against the PyTorch NCHW reference.
    x_nhwc = jnp.transpose(x_nchw, (0, 2, 3, 1))

    out_nhwc = seq_ex_block_cs_nhwc(x_nhwc, conv_w, conv_b,
                                    lin1_w, lin1_b, lin2_w, lin2_b)
    out_nhwc = jax.block_until_ready(out_nhwc)
    out_nchw = jnp.transpose(out_nhwc.astype(jnp.float32), (0, 3, 1, 2))

    # Reference on the bf16-quantised input (kernel stores activations in
    # bf16); tolerance loosened accordingly, math is f32 in both paths.
    x_q = x_nchw.astype(jnp.bfloat16).astype(jnp.float32)
    ref = _reference_nchw(x_q, conv_w, conv_b, lin1_w, lin1_b, lin2_w, lin2_b)

    assert out_nchw.shape == (N, C, H, W)
    assert jnp.allclose(out_nchw, ref, atol=2e-2, rtol=2e-2), "mismatch vs reference"

    print("KERNEL_OK")
</pallas_src>

<mosaic_0001>
module attributes {stable_mosaic.version = 11 : i64} {
  func.func @_se_cs_kernel(%arg0: i32, %arg1: memref<1x64x128xbf16, #tpu.memory_space<vmem>>, %arg2: memref<128x128xf32, #tpu.memory_space<vmem>>, %arg3: memref<1xf32, #tpu.memory_space<smem>>, %arg4: memref<128x16xf32, #tpu.memory_space<vmem>>, %arg5: memref<1x16xf32, #tpu.memory_space<vmem>>, %arg6: memref<16x128xf32, #tpu.memory_space<vmem>>, %arg7: memref<1x128xf32, #tpu.memory_space<vmem>>, %arg8: memref<1x64x128xbf16, #tpu.memory_space<vmem>>) attributes {dimension_semantics = [#tpu.dimension_semantics<parallel>], iteration_bounds = array<i64: 2>, scalar_prefetch = 0 : i64, scratch_operands = 0 : i64, tpu.core_type = #tpu.core_type<tc>, window_params = [{transform_indices = @transform_0, window_bounds = array<i64: 1, 64, 128>}, {pipeline_mode = #tpu.pipeline_mode<synchronous>, transform_indices = @transform_1, window_bounds = array<i64: 128, 128>}, {transform_indices = @transform_2, window_bounds = array<i64: 1>}, {pipeline_mode = #tpu.pipeline_mode<synchronous>, transform_indices = @transform_3, window_bounds = array<i64: 128, 16>}, {pipeline_mode = #tpu.pipeline_mode<synchronous>, transform_indices = @transform_4, window_bounds = array<i64: 1, 16>}, {pipeline_mode = #tpu.pipeline_mode<synchronous>, transform_indices = @transform_5, window_bounds = array<i64: 16, 128>}, {pipeline_mode = #tpu.pipeline_mode<synchronous>, transform_indices = @transform_6, window_bounds = array<i64: 1, 128>}, {transform_indices = @transform_7, window_bounds = array<i64: 1, 64, 128>}]} {
    %c0 = arith.constant 0 : index
    %c0_0 = arith.constant 0 : index
    %c0_1 = arith.constant 0 : index
    %0 = vector.load %arg1[%c0, %c0_0, %c0_1] : memref<1x64x128xbf16, #tpu.memory_space<vmem>>, vector<1x64x128xbf16>
    %1 = arith.extf %0 : vector<1x64x128xbf16> to vector<1x64x128xf32>
    %2 = vector.shape_cast %1 : vector<1x64x128xf32> to vector<64x128xf32>
    %c0_2 = arith.constant 0 : index
    %c0_3 = arith.constant 0 : index
    %3 = vector.load %arg2[%c0_2, %c0_3] : memref<128x128xf32, #tpu.memory_space<vmem>>, vector<128x128xf32>
    %cst = arith.constant dense<0.000000e+00> : vector<64x128xf32>
    %4 = tpu.matmul %2, %3, %cst {dimension_numbers = #tpu.dot_dimension_numbers<[1], [0], [0], [1], [0, 0, 1, 1], [], []>} : vector<64x128xf32>, vector<128x128xf32>, vector<64x128xf32> -> vector<64x128xf32>
    %c0_4 = arith.constant 0 : index
    %5 = memref.load %arg3[%c0_4] : memref<1xf32, #tpu.memory_space<smem>>
    %6 = vector.broadcast %5 : f32 to vector<64x128xf32>
    %7 = arith.addf %4, %6 : vector<64x128xf32>
    %8 = arith.negf %7 : vector<64x128xf32>
    %9 = math.exp %8 : vector<64x128xf32>
    %cst_5 = arith.constant 1.000000e+00 : f32
    %10 = vector.broadcast %cst_5 : f32 to vector<64x128xf32>
    %11 = arith.addf %10, %9 : vector<64x128xf32>
    %12 = arith.divf %10, %11 : vector<64x128xf32>
    %13 = vector.shape_cast %12 : vector<64x128xf32> to vector<1x64x128xf32>
    %cst_6 = arith.constant dense<0.000000e+00> : vector<1x128xf32>
    %14 = vector.multi_reduction <add>, %1, %cst_6 [1] : vector<1x64x128xf32> to vector<1x128xf32>
    %cst_7 = arith.constant 1.562500e-02 : f32
    %15 = vector.broadcast %cst_7 : f32 to vector<1x128xf32>
    %16 = arith.mulf %14, %15 : vector<1x128xf32>
    %c0_8 = arith.constant 0 : index
    %c0_9 = arith.constant 0 : index
    %17 = vector.load %arg4[%c0_8, %c0_9] : memref<128x16xf32, #tpu.memory_space<vmem>>, vector<128x16xf32>
    %cst_10 = arith.constant dense<0.000000e+00> : vector<1x16xf32>
    %18 = tpu.matmul %16, %17, %cst_10 {dimension_numbers = #tpu.dot_dimension_numbers<[1], [0], [0], [1], [0, 0, 1, 1], [], []>} : vector<1x128xf32>, vector<128x16xf32>, vector<1x16xf32> -> vector<1x16xf32>
    %c0_11 = arith.constant 0 : index
    %c0_12 = arith.constant 0 : index
    %19 = vector.load %arg5[%c0_11, %c0_12] : memref<1x16xf32, #tpu.memory_space<vmem>>, vector<1x16xf32>
    %20 = arith.addf %18, %19 : vector<1x16xf32>
    %cst_13 = arith.constant 0.000000e+00 : f32
    %21 = vector.broadcast %cst_13 : f32 to vector<1x16xf32>
    %22 = arith.maximumf %20, %21 : vector<1x16xf32>
    %c0_14 = arith.constant 0 : index
    %c0_15 = arith.constant 0 : index
    %23 = vector.load %arg6[%c0_14, %c0_15] : memref<16x128xf32, #tpu.memory_space<vmem>>, vector<16x128xf32>
    %cst_16 = arith.constant dense<0.000000e+00> : vector<1x128xf32>
    %24 = tpu.matmul %22, %23, %cst_16 {dimension_numbers = #tpu.dot_dimension_numbers<[1], [0], [0], [1], [0, 0, 1, 1], [], []>} : vector<1x16xf32>, vector<16x128xf32>, vector<1x128xf32> -> vector<1x128xf32>
    %c0_17 = arith.constant 0 : index
    %c0_18 = arith.constant 0 : index
    %25 = vector.load %arg7[%c0_17, %c0_18] : memref<1x128xf32, #tpu.memory_space<vmem>>, vector<1x128xf32>
    %26 = arith.addf %24, %25 : vector<1x128xf32>
    %27 = arith.negf %26 : vector<1x128xf32>
    %28 = math.exp %27 : vector<1x128xf32>
    %cst_19 = arith.constant 1.000000e+00 : f32
    %29 = vector.broadcast %cst_19 : f32 to vector<1x128xf32>
    %30 = arith.addf %29, %28 : vector<1x128xf32>
    %31 = arith.divf %29, %30 : vector<1x128xf32>
    %32 = vector.shape_cast %31 : vector<1x128xf32> to vector<1x1x128xf32>
    %33 = vector.broadcast %32 : vector<1x1x128xf32> to vector<1x64x128xf32>
    %34 = arith.addf %13, %33 : vector<1x64x128xf32>
    %35 = arith.mulf %1, %34 : vector<1x64x128xf32>
    %36 = arith.truncf %35 : vector<1x64x128xf32> to vector<1x64x128xbf16>
    %c0_20 = arith.constant 0 : index
    %c0_21 = arith.constant 0 : index
    %c0_22 = arith.constant 0 : index
    %37 = vector.load %arg8[%c0_20, %c0_21, %c0_22] : memref<1x64x128xbf16, #tpu.memory_space<vmem>>, vector<1x64x128xbf16>
    tpu.vector_store %arg8[%c0_20, %c0_21, %c0_22], %36 {strides = array<i32>} : memref<1x64x128xbf16, #tpu.memory_space<vmem>>, vector<1x64x128xbf16>,
    return
  }
  func.func @transform_0(%arg0: i32) -> (i32, i32, i32) {
    %c0_i32 = arith.constant 0 : i32
    %c0_i32_0 = arith.constant 0 : i32
    %c0_i32_1 = arith.constant 0 : i32
    return %arg0, %c0_i32, %c0_i32_0 : i32, i32, i32
  }
  func.func @transform_1(%arg0: i32) -> (i32, i32) {
    %c0_i32 = arith.constant 0 : i32
    %c0_i32_0 = arith.constant 0 : i32
    %c0_i32_1 = arith.constant 0 : i32
    return %c0_i32, %c0_i32_0 : i32, i32
  }
  func.func @transform_2(%arg0: i32) -> i32 {
    %c0_i32 = arith.constant 0 : i32
    %c0_i32_0 = arith.constant 0 : i32
    return %c0_i32 : i32
  }
  func.func @transform_3(%arg0: i32) -> (i32, i32) {
    %c0_i32 = arith.constant 0 : i32
    %c0_i32_0 = arith.constant 0 : i32
    %c0_i32_1 = arith.constant 0 : i32
    return %c0_i32, %c0_i32_0 : i32, i32
  }
  func.func @transform_4(%arg0: i32) -> (i32, i32) {
    %c0_i32 = arith.constant 0 : i32
    %c0_i32_0 = arith.constant 0 : i32
    %c0_i32_1 = arith.constant 0 : i32
    return %c0_i32, %c0_i32_0 : i32, i32
  }
  func.func @transform_5(%arg0: i32) -> (i32, i32) {
    %c0_i32 = arith.constant 0 : i32
    %c0_i32_0 = arith.constant 0 : i32
    %c0_i32_1 = arith.constant 0 : i32
    return %c0_i32, %c0_i32_0 : i32, i32
  }
  func.func @transform_6(%arg0: i32) -> (i32, i32) {
    %c0_i32 = arith.constant 0 : i32
    %c0_i32_0 = arith.constant 0 : i32
    %c0_i32_1 = arith.constant 0 : i32
    return %c0_i32, %c0_i32_0 : i32, i32
  }
  func.func @transform_7(%arg0: i32) -> (i32, i32, i32) {
    %c0_i32 = arith.constant 0 : i32
    %c0_i32_0 = arith.constant 0 : i32
    %c0_i32_1 = arith.constant 0 : i32
    return %arg0, %c0_i32, %c0_i32_0 : i32, i32, i32
  }
}

module attributes {stable_mosaic.version = 11 : i64} {
  func.func @_se_cs_kernel(%arg0: i32, %arg1: memref<1x64x128xbf16, #tpu.memory_space<vmem>>, %arg2: memref<128x128xf32, #tpu.memory_space<vmem>>, %arg3: memref<1xf32, #tpu.memory_space<smem>>, %arg4: memref<128x16xf32, #tpu.memory_space<vmem>>, %arg5: memref<1x16xf32, #tpu.memory_space<vmem>>, %arg6: memref<16x128xf32, #tpu.memory_space<vmem>>, %arg7: memref<1x128xf32, #tpu.memory_space<vmem>>, %arg8: memref<1x64x128xbf16, #tpu.memory_space<vmem>>) attributes {dimension_semantics = [#tpu.dimension_semantics<parallel>], iteration_bounds = array<i64: 2>, scalar_prefetch = 0 : i64, scratch_operands = 0 : i64, tpu.core_type = #tpu.core_type<tc>, window_params = [{transform_indices = @transform_0, window_bounds = array<i64: 1, 64, 128>}, {pipeline_mode = #tpu.pipeline_mode<synchronous>, transform_indices = @transform_1, window_bounds = array<i64: 128, 128>}, {transform_indices = @transform_2, window_bounds = array<i64: 1>}, {pipeline_mode = #tpu.pipeline_mode<synchronous>, transform_indices = @transform_3, window_bounds = array<i64: 128, 16>}, {pipeline_mode = #tpu.pipeline_mode<synchronous>, transform_indices = @transform_4, window_bounds = array<i64: 1, 16>}, {pipeline_mode = #tpu.pipeline_mode<synchronous>, transform_indices = @transform_5, window_bounds = array<i64: 16, 128>}, {pipeline_mode = #tpu.pipeline_mode<synchronous>, transform_indices = @transform_6, window_bounds = array<i64: 1, 128>}, {transform_indices = @transform_7, window_bounds = array<i64: 1, 64, 128>}]} {
    %c0 = arith.constant 0 : index
    %c0_0 = arith.constant 0 : index
    %c0_1 = arith.constant 0 : index
    %0 = vector.load %arg1[%c0, %c0_0, %c0_1] : memref<1x64x128xbf16, #tpu.memory_space<vmem>>, vector<1x64x128xbf16>
    %1 = arith.extf %0 : vector<1x64x128xbf16> to vector<1x64x128xf32>
    %2 = vector.shape_cast %1 : vector<1x64x128xf32> to vector<64x128xf32>
    %c0_2 = arith.constant 0 : index
    %c0_3 = arith.constant 0 : index
    %3 = vector.load %arg2[%c0_2, %c0_3] : memref<128x128xf32, #tpu.memory_space<vmem>>, vector<128x128xf32>
    %cst = arith.constant dense<0.000000e+00> : vector<64x128xf32>
    %4 = tpu.matmul %2, %3, %cst {dimension_numbers = #tpu.dot_dimension_numbers<[1], [0], [0], [1], [0, 0, 1, 1], [], []>} : vector<64x128xf32>, vector<128x128xf32>, vector<64x128xf32> -> vector<64x128xf32>
    %c0_4 = arith.constant 0 : index
    %5 = memref.load %arg3[%c0_4] : memref<1xf32, #tpu.memory_space<smem>>
    %6 = vector.broadcast %5 : f32 to vector<64x128xf32>
    %7 = arith.addf %4, %6 : vector<64x128xf32>
    %8 = arith.negf %7 : vector<64x128xf32>
    %9 = math.exp %8 : vector<64x128xf32>
    %cst_5 = arith.constant 1.000000e+00 : f32
    %10 = vector.broadcast %cst_5 : f32 to vector<64x128xf32>
    %11 = arith.addf %10, %9 : vector<64x128xf32>
    %12 = arith.divf %10, %11 : vector<64x128xf32>
    %13 = vector.shape_cast %12 : vector<64x128xf32> to vector<1x64x128xf32>
    %cst_6 = arith.constant dense<0.000000e+00> : vector<1x128xf32>
    %14 = vector.multi_reduction <add>, %1, %cst_6 [1] : vector<1x64x128xf32> to vector<1x128xf32>
    %cst_7 = arith.constant 1.562500e-02 : f32
    %15 = vector.broadcast %cst_7 : f32 to vector<1x128xf32>
    %16 = arith.mulf %14, %15 : vector<1x128xf32>
    %c0_8 = arith.constant 0 : index
    %c0_9 = arith.constant 0 : index
    %17 = vector.load %arg4[%c0_8, %c0_9] : memref<128x16xf32, #tpu.memory_space<vmem>>, vector<128x16xf32>
    %cst_10 = arith.constant dense<0.000000e+00> : vector<1x16xf32>
    %18 = tpu.matmul %16, %17, %cst_10 {dimension_numbers = #tpu.dot_dimension_numbers<[1], [0], [0], [1], [0, 0, 1, 1], [], []>} : vector<1x128xf32>, vector<128x16xf32>, vector<1x16xf32> -> vector<1x16xf32>
    %c0_11 = arith.constant 0 : index
    %c0_12 = arith.constant 0 : index
    %19 = vector.load %arg5[%c0_11, %c0_12] : memref<1x16xf32, #tpu.memory_space<vmem>>, vector<1x16xf32>
    %20 = arith.addf %18, %19 : vector<1x16xf32>
    %cst_13 = arith.constant 0.000000e+00 : f32
    %21 = vector.broadcast %cst_13 : f32 to vector<1x16xf32>
    %22 = arith.maximumf %20, %21 : vector<1x16xf32>
    %c0_14 = arith.constant 0 : index
    %c0_15 = arith.constant 0 : index
    %23 = vector.load %arg6[%c0_14, %c0_15] : memref<16x128xf32, #tpu.memory_space<vmem>>, vector<16x128xf32>
    %cst_16 = arith.constant dense<0.000000e+00> : vector<1x128xf32>
    %24 = tpu.matmul %22, %23, %cst_16 {dimension_numbers = #tpu.dot_dimension_numbers<[1], [0], [0], [1], [0, 0, 1, 1], [], []>} : vector<1x16xf32>, vector<16x128xf32>, vector<1x128xf32> -> vector<1x128xf32>
    %c0_17 = arith.constant 0 : index
    %c0_18 = arith.constant 0 : index
    %25 = vector.load %arg7[%c0_17, %c0_18] : memref<1x128xf32, #tpu.memory_space<vmem>>, vector<1x128xf32>
    %26 = arith.addf %24, %25 : vector<1x128xf32>
    %27 = arith.negf %26 : vector<1x128xf32>
    %28 = math.exp %27 : vector<1x128xf32>
    %cst_19 = arith.constant 1.000000e+00 : f32
    %29 = vector.broadcast %cst_19 : f32 to vector<1x128xf32>
    %30 = arith.addf %29, %28 : vector<1x128xf32>
    %31 = arith.divf %29, %30 : vector<1x128xf32>
    %32 = vector.shape_cast %31 : vector<1x128xf32> to vector<1x1x128xf32>
    %33 = vector.broadcast %32 : vector<1x1x128xf32> to vector<1x64x128xf32>
    %34 = arith.addf %13, %33 : vector<1x64x128xf32>
    %35 = arith.mulf %1, %34 : vector<1x64x128xf32>
    %36 = arith.truncf %35 : vector<1x64x128xf32> to vector<1x64x128xbf16>
    %c0_20 = arith.constant 0 : index
    %c0_21 = arith.constant 0 : index
    %c0_22 = arith.constant 0 : index
    %37 = vector.load %arg8[%c0_20, %c0_21, %c0_22] : memref<1x64x128xbf16, #tpu.memory_space<vmem>>, vector<1x64x128xbf16>
    tpu.vector_store %arg8[%c0_20, %c0_21, %c0_22], %36 {strides = array<i32>} : memref<1x64x128xbf16, #tpu.memory_space<vmem>>, vector<1x64x128xbf16>,
    return
  }
  func.func @transform_0(%arg0: i32) -> (i32, i32, i32) {
    %c0_i32 = arith.constant 0 : i32
    %c0_i32_0 = arith.constant 0 : i32
    %c0_i32_1 = arith.constant 0 : i32
    return %arg0, %c0_i32, %c0_i32_0 : i32, i32, i32
  }
  func.func @transform_1(%arg0: i32) -> (i32, i32) {
    %c0_i32 = arith.constant 0 : i32
    %c0_i32_0 = arith.constant 0 : i32
    %c0_i32_1 = arith.constant 0 : i32
    return %c0_i32, %c0_i32_0 : i32, i32
  }
  func.func @transform_2(%arg0: i32) -> i32 {
    %c0_i32 = arith.constant 0 : i32
    %c0_i32_0 = arith.constant 0 : i32
    return %c0_i32 : i32
  }
  func.func @transform_3(%arg0: i32) -> (i32, i32) {
    %c0_i32 = arith.constant 0 : i32
    %c0_i32_0 = arith.constant 0 : i32
    %c0_i32_1 = arith.constant 0 : i32
    return %c0_i32, %c0_i32_0 : i32, i32
  }
  func.func @transform_4(%arg0: i32) -> (i32, i32) {
    %c0_i32 = arith.constant 0 : i32
    %c0_i32_0 = arith.constant 0 : i32
    %c0_i32_1 = arith.constant 0 : i32
    return %c0_i32, %c0_i32_0 : i32, i32
  }
  func.func @transform_5(%arg0: i32) -> (i32, i32) {
    %c0_i32 = arith.constant 0 : i32
    %c0_i32_0 = arith.constant 0 : i32
    %c0_i32_1 = arith.constant 0 : i32
    return %c0_i32, %c0_i32_0 : i32, i32
  }
  func.func @transform_6(%arg0: i32) -> (i32, i32) {
    %c0_i32 = arith.constant 0 : i32
    %c0_i32_0 = arith.constant 0 : i32
    %c0_i32_1 = arith.constant 0 : i32
    return %c0_i32, %c0_i32_0 : i32, i32
  }
  func.func @transform_7(%arg0: i32) -> (i32, i32, i32) {
    %c0_i32 = arith.constant 0 : i32
    %c0_i32_0 = arith.constant 0 : i32
    %c0_i32_1 = arith.constant 0 : i32
    return %arg0, %c0_i32, %c0_i32_0 : i32, i32, i32
  }
}

</mosaic_0001>

<llo_original>
// kernel: tpu_custom_call.1
$region0: #{tpu_custom_call.1}
  #allocation0 [shape = 'u32[]', space=smem, size = 0x4, offset = 0x4, fixed_abs, tag = 'smem constant byte address 0x4 - core index']
  #allocation1 [shape = 'u32[144,128]{1,0:T(1,128)}', space=vmem, size = 0x12000, scoped, tag = 'internal scratch']
  #allocation2 [shape = 'f32[1]{0:T(128)S(6)}', space=smem, size = 0x200, scoped, tag = 'scoped memory for tpu_custom_call.1']
  %s0 = inlined_call_operand.hbm [shape: bf16[2,64,128], index: 0, kind: input, shape index: {}, may-alias: {0,7}]
  %s1 = inlined_call_operand.vmem [shape: f32[128,128], index: 1, kind: input, shape index: {}]
  %s2 = inlined_call_operand.<no memory space> [shape: f32[1], index: 2, kind: input, shape index: {}]
  %s3 = inlined_call_operand.vmem [shape: f32[128,16], index: 3, kind: input, shape index: {}]
  %s4 = inlined_call_operand.vmem [shape: f32[1,16], index: 4, kind: input, shape index: {}]
  %s5 = inlined_call_operand.vmem [shape: f32[16,128], index: 5, kind: input, shape index: {}]
  %s6 = inlined_call_operand.vmem [shape: f32[1,128], index: 6, kind: input, shape index: {}]
  %s7 = inlined_call_operand.hbm [shape: bf16[2,64,128], index: 7, kind: output, shape index: {}, may-alias: {0,7}]
  %s8 = sld [smem:[#allocation0]]
  $region65: #{tpu_custom_call.1} parent=0
    _
  %s10 = ssub.s32 1, %s8
  %s11 = scalar_select 0, %s10, %s8
  %12 = sst [smem:[#allocation2]] %s2
  $region1: #{tpu_custom_call.1} parent=0
    #allocation3 [shape = 'u8[32768]{0}', space=vmem, size = 0x8000, scoped, tag = 'input window, operand 0']
    #allocation4 [shape = 's32[2]{0}', space=sflag, size = 0x8, scoped, tag = 'scoped memory for tpu_custom_call.1']
    #allocation5 [shape = 's32[2]{0}', space=sflag, size = 0x8, scoped, tag = 'scoped memory for tpu_custom_call.1']
    #allocation6 [shape = 'u8[32768]{0}', space=vmem, size = 0x8000, scoped, tag = 'output window, operand 0']
    %13 = vsyncpa [#allocation4], 0
    %s14 = scalar_lea.sflag [#allocation4], 1
    %15 = vsyncpa %s14, 0
    %16 = vsyncpa [#allocation5], 0
    %s17 = scalar_lea.sflag [#allocation5], 1
    %18 = vsyncpa %s17, 0
    loop: start=0, step=1, limit=4
    $region2: #{tpu_custom_call.1} parent=1 // loop_pre_header
      _
    $region3: #{tpu_custom_call.1} parent=1 // loop_header
      %s20 = sphi 0, %s24
      %p21 = scmp.ge.s32.totalorder %s20, 4
      %s30 = sphi 0, %s32
      %s33 = sphi 0, %s30
      %s34 = sphi 0, %s33
      %s50 = sphi 0, %s34
      %s54 = sphi 0, %s54
      %s56 = sphi 0, %s54
      %s57 = sphi 0, %s56
      %s71 = sphi 0, %s57
      %s75 = sphi 0, %s75
      %s77 = sphi 0, %s75
      %s78 = sphi 0, %s77
      %s92 = sphi 0, %s78
      %s96 = sphi 0, %s96
      %s98 = sphi 0, %s96
      %s99 = sphi 0, %s98
      %s113 = sphi 0, %s99
      %s117 = sphi 0, %s117
      %s119 = sphi 0, %s117
      %s120 = sphi 0, %s119
      %s134 = sphi 0, %s120
      %s138 = sphi 0, %s138
      %s140 = sphi 0, %s138
      %s141 = sphi 0, %s140
      %s155 = sphi 0, %s141
      %s159 = sphi 0, %s159
      %s161 = sphi 0, %s159
      %s162 = sphi 0, %s161
      %s176 = sphi 0, %s162
      %s182 = sphi 0, %s184
      %s185 = sphi 0, %s182
      %s186 = sphi 0, %s185
      %s202 = sphi 0, %s186
    $region4: #{tpu_custom_call.1} parent=1 // loop_header_branch
      %23 = sbr.rel (%p21) target = $region8
    $region5: #{tpu_custom_call.1} parent=1 // loop_body
      %s25 = ssub.s32 %s20, 1
      %s26 = ssub.s32 %s20, 2
      %s27 = sadd.s32 %s20, 1
      %s28 = ssub.s32 %s20, %s27
      %p29 = scmp.eq.s32.totalorder %s28, 0
      %s31 = sadd.s32 %s30, 1
      %s32 = scalar_select %p29, %s30, %s31
      %p35 = pneg %p29
      %p36 = scmp.eq.s32.totalorder %s20, 1
      %p37 = por %p35, %p36
      %p38 = scmp.ne.s32.totalorder %s30, %s33
      %p39 = scmp.eq.s32.totalorder %s20, 0
      %p40 = por %p38, %p39
      %p41 = scmp.ne.s32.totalorder %s30, %s33
      %p42 = scmp.eq.s32.totalorder %s25, 1
      %p43 = por %p41, %p42
      %p44 = scmp.ne.s32.totalorder %s33, %s34
      %p45 = scmp.eq.s32.totalorder %s25, 0
      %p46 = por %p44, %p45
      %p47 = scmp.ne.s32.totalorder %s33, %s34
      %p48 = scmp.eq.s32.totalorder %s26, 1
      %p49 = por %p47, %p48
      %p51 = scmp.ne.s32.totalorder %s34, %s50
      %p52 = scmp.eq.s32.totalorder %s26, 0
      %p53 = por %p51, %p52
      %s55 = sadd.s32 %s54, 1
      %p58 = scmp.eq.s32.totalorder %s20, 1
      %p59 = scmp.ne.s32.totalorder %s54, %s56
      %p60 = scmp.eq.s32.totalorder %s20, 0
      %p61 = por %p59, %p60
      %p62 = scmp.ne.s32.totalorder %s54, %s56
      %p63 = scmp.eq.s32.totalorder %s25, 1
      %p64 = por %p62, %p63
      %p65 = scmp.ne.s32.totalorder %s56, %s57
      %p66 = scmp.eq.s32.totalorder %s25, 0
      %p67 = por %p65, %p66
      %p68 = scmp.ne.s32.totalorder %s56, %s57
      %p69 = scmp.eq.s32.totalorder %s26, 1
      %p70 = por %p68, %p69
      %p72 = scmp.ne.s32.totalorder %s57, %s71
      %p73 = scmp.eq.s32.totalorder %s26, 0
      %p74 = por %p72, %p73
      %s76 = sadd.s32 %s75, 1
      %p79 = scmp.eq.s32.totalorder %s20, 1
      %p80 = scmp.ne.s32.totalorder %s75, %s77
      %p81 = scmp.eq.s32.totalorder %s20, 0
      %p82 = por %p80, %p81
      %p83 = scmp.ne.s32.totalorder %s75, %s77
      %p84 = scmp.eq.s32.totalorder %s25, 1
      %p85 = por %p83, %p84
      %p86 = scmp.ne.s32.totalorder %s77, %s78
      %p87 = scmp.eq.s32.totalorder %s25, 0
      %p88 = por %p86, %p87
      %p89 = scmp.ne.s32.totalorder %s77, %s78
      %p90 = scmp.eq.s32.totalorder %s26, 1
      %p91 = por %p89, %p90
      %p93 = scmp.ne.s32.totalorder %s78, %s92
      %p94 = scmp.eq.s32.totalorder %s26, 0
      %p95 = por %p93, %p94
      %s97 = sadd.s32 %s96, 1
      %p100 = scmp.eq.s32.totalorder %s20, 1
      %p101 = scmp.ne.s32.totalorder %s96, %s98
      %p102 = scmp.eq.s32.totalorder %s20, 0
      %p103 = por %p101, %p102
      %p104 = scmp.ne.s32.totalorder %s96, %s98
      %p105 = scmp.eq.s32.totalorder %s25, 1
      %p106 = por %p104, %p105
      %p107 = scmp.ne.s32.totalorder %s98, %s99
      %p108 = scmp.eq.s32.totalorder %s25, 0
      %p109 = por %p107, %p108
      %p110 = scmp.ne.s32.totalorder %s98, %s99
      %p111 = scmp.eq.s32.totalorder %s26, 1
      %p112 = por %p110, %p111
      %p114 = scmp.ne.s32.totalorder %s99, %s113
      %p115 = scmp.eq.s32.totalorder %s26, 0
      %p116 = por %p114, %p115
      %s118 = sadd.s32 %s117, 1
      %p121 = scmp.eq.s32.totalorder %s20, 1
      %p122 = scmp.ne.s32.totalorder %s117, %s119
      %p123 = scmp.eq.s32.totalorder %s20, 0
      %p124 = por %p122, %p123
      %p125 = scmp.ne.s32.totalorder %s117, %s119
      %p126 = scmp.eq.s32.totalorder %s25, 1
      %p127 = por %p125, %p126
      %p128 = scmp.ne.s32.totalorder %s119, %s120
      %p129 = scmp.eq.s32.totalorder %s25, 0
      %p130 = por %p128, %p129
      %p131 = scmp.ne.s32.totalorder %s119, %s120
      %p132 = scmp.eq.s32.totalorder %s26, 1
      %p133 = por %p131, %p132
      %p135 = scmp.ne.s32.totalorder %s120, %s134
      %p136 = scmp.eq.s32.totalorder %s26, 0
      %p137 = por %p135, %p136
      %s139 = sadd.s32 %s138, 1
      %p142 = scmp.eq.s32.totalorder %s20, 1
      %p143 = scmp.ne.s32.totalorder %s138, %s140
      %p144 = scmp.eq.s32.totalorder %s20, 0
      %p145 = por %p143, %p144
      %p146 = scmp.ne.s32.totalorder %s138, %s140
      %p147 = scmp.eq.s32.totalorder %s25, 1
      %p148 = por %p146, %p147
      %p149 = scmp.ne.s32.totalorder %s140, %s141
      %p150 = scmp.eq.s32.totalorder %s25, 0
      %p151 = por %p149, %p150
      %p152 = scmp.ne.s32.totalorder %s140, %s141
      %p153 = scmp.eq.s32.totalorder %s26, 1
      %p154 = por %p152, %p153
      %p156 = scmp.ne.s32.totalorder %s141, %s155
      %p157 = scmp.eq.s32.totalorder %s26, 0
      %p158 = por %p156, %p157
      %s160 = sadd.s32 %s159, 1
      %p163 = scmp.eq.s32.totalorder %s20, 1
      %p164 = scmp.ne.s32.totalorder %s159, %s161
      %p165 = scmp.eq.s32.totalorder %s20, 0
      %p166 = por %p164, %p165
      %p167 = scmp.ne.s32.totalorder %s159, %s161
      %p168 = scmp.eq.s32.totalorder %s25, 1
      %p169 = por %p167, %p168
      %p170 = scmp.ne.s32.totalorder %s161, %s162
      %p171 = scmp.eq.s32.totalorder %s25, 0
      %p172 = por %p170, %p171
      %p173 = scmp.ne.s32.totalorder %s161, %s162
      %p174 = scmp.eq.s32.totalorder %s26, 1
      %p175 = por %p173, %p174
      %p177 = scmp.ne.s32.totalorder %s162, %s176
      %p178 = scmp.eq.s32.totalorder %s26, 0
      %p179 = por %p177, %p178
      %s180 = ssub.s32 %s20, %s27
      %p181 = scmp.eq.s32.totalorder %s180, 0
      %s183 = sadd.s32 %s182, 1
      %s184 = scalar_select %p181, %s182, %s183
      %p187 = pneg %p181
      %p188 = scmp.eq.s32.totalorder %s20, 1
      %p189 = por %p187, %p188
      %p190 = scmp.ne.s32.totalorder %s182, %s185
      %p191 = scmp.eq.s32.totalorder %s20, 0
      %p192 = por %p190, %p191
      %p193 = scmp.ne.s32.totalorder %s182, %s185
      %p194 = scmp.eq.s32.totalorder %s25, 1
      %p195 = por %p193, %p194
      %p196 = scmp.ne.s32.totalorder %s185, %s186
      %p197 = scmp.eq.s32.totalorder %s25, 0
      %p198 = por %p196, %p197
      %p199 = scmp.ne.s32.totalorder %s185, %s186
      %p200 = scmp.eq.s32.totalorder %s26, 1
      %p201 = por %p199, %p200
      %p203 = scmp.ne.s32.totalorder %s186, %s202
      %p204 = scmp.eq.s32.totalorder %s26, 0
      %p205 = por %p203, %p204
      %p206 = scmp.le.s32.totalorder 1, %s20
      %p207 = scmp.lt.s32.totalorder %s20, 3
      %p208 = pnand %p206, %p207
      %p209 = pneg %p208
      // Predicated region
      $region9: #{tpu_custom_call.1} parent=5 // pred_check
        _
      $region10: #{tpu_custom_call.1} parent=5 // pred_check_branch
        %211 = sbr.rel (%p208) target = $region12
      $region11: #{tpu_custom_call.1} parent=5 // pred_region
        %s212 = ssub.s32 %s20, 1
        // Predicated region
        $region13: #{tpu_custom_call.1} parent=11 // pred_check
          %p213 = pneg %p67
        $region14: #{tpu_custom_call.1} parent=11 // pred_check_branch
          %215 = sbr.rel (%p213) target = $region16
        $region15: #{tpu_custom_call.1} parent=11 // pred_region
          _
        $region16: #{tpu_custom_call.1} parent=11 // pred_fallthru
          _
        // Predicated region
        $region17: #{tpu_custom_call.1} parent=11 // pred_check
          %p216 = pneg %p88
        $region18: #{tpu_custom_call.1} parent=11 // pred_check_branch
          %218 = sbr.rel (%p216) target = $region20
        $region19: #{tpu_custom_call.1} parent=11 // pred_region
          _
        $region20: #{tpu_custom_call.1} parent=11 // pred_fallthru
          _
        // Predicated region
        $region21: #{tpu_custom_call.1} parent=11 // pred_check
          %p219 = pneg %p109
        $region22: #{tpu_custom_call.1} parent=11 // pred_check_branch
          %221 = sbr.rel (%p219) target = $region24
        $region23: #{tpu_custom_call.1} parent=11 // pred_region
          _
        $region24: #{tpu_custom_call.1} parent=11 // pred_fallthru
          _
        // Predicated region
        $region25: #{tpu_custom_call.1} parent=11 // pred_check
          %p222 = pneg %p130
        $region26: #{tpu_custom_call.1} parent=11 // pred_check_branch
          %224 = sbr.rel (%p222) target = $region28
        $region27: #{tpu_custom_call.1} parent=11 // pred_region
          _
        $region28: #{tpu_custom_call.1} parent=11 // pred_fallthru
          _
        // Predicated region
        $region29: #{tpu_custom_call.1} parent=11 // pred_check
          %p225 = pneg %p151
        $region30: #{tpu_custom_call.1} parent=11 // pred_check_branch
          %227 = sbr.rel (%p225) target = $region32
        $region31: #{tpu_custom_call.1} parent=11 // pred_region
          _
        $region32: #{tpu_custom_call.1} parent=11 // pred_fallthru
          _
        // Predicated region
        $region33: #{tpu_custom_call.1} parent=11 // pred_check
          %p228 = pneg %p172
        $region34: #{tpu_custom_call.1} parent=11 // pred_check_branch
          %230 = sbr.rel (%p228) target = $region36
        $region35: #{tpu_custom_call.1} parent=11 // pred_region
          _
        $region36: #{tpu_custom_call.1} parent=11 // pred_fallthru
          _
      $region12: #{tpu_custom_call.1} parent=5 // pred_fallthru
        _
      %p231 = scmp.lt.s32.totalorder %s20, 2
      // Predicated region
      $region37: #{tpu_custom_call.1} parent=5 // pred_check
        %p232 = pneg %p231
      $region38: #{tpu_custom_call.1} parent=5 // pred_check_branch
        %234 = sbr.rel (%p232) target = $region40
      $region39: #{tpu_custom_call.1} parent=5 // pred_region
        // Predicated region
        $region41: #{tpu_custom_call.1} parent=39 // pred_check
          %p235 = pneg %p40
        $region42: #{tpu_custom_call.1} parent=39 // pred_check_branch
          %237 = sbr.rel (%p235) target = $region44
        $region43: #{tpu_custom_call.1} parent=39 // pred_region
          %s238 = sand.u32 %s30, 1
          %s239 = scalar_lea.sflag [#allocation4], %s238
          %s240 = sand.u32 %s30, 1
          %s241 = smul.addr %s240, 32
          %s242 = scalar_lea.vmem [#allocation3], %s241
          %s244 = ssub.s32 512, 512
          %245 = vsyncadd %s239, %s244
          %s246 = smul.addr %s20, 8
          %s247 = smul.addr %s246, 64
          %s248 = scalar_lea.hbm %s0, %s247
          %s249 = sshll.u32 %s242, 4
          %s250 = int_to_ptr.vmem [resolvable:$true] %s249
          %255 = dma.hbm_to_vmem [thread:$0]  %s248, 512, %s250, %s239, 64, 64, 4
        $region44: #{tpu_custom_call.1} parent=39 // pred_fallthru
          _
      $region40: #{tpu_custom_call.1} parent=5 // pred_fallthru
        _
      %p256 = scmp.le.s32.totalorder 1, %s20
      %p257 = scmp.lt.s32.totalorder %s20, 3
      %p258 = pnand %p256, %p257
      %p259 = pneg %p258
      // Predicated region
      $region45: #{tpu_custom_call.1} parent=5 // pred_check
        _
      $region46: #{tpu_custom_call.1} parent=5 // pred_check_branch
        %261 = sbr.rel (%p258) target = $region48
      $region47: #{tpu_custom_call.1} parent=5 // pred_region
        %s262 = ssub.s32 %s20, 1
        %s263 = sand.u32 %s33, 1
        %s264 = scalar_lea.sflag [#allocation4], %s263
        %s265 = sand.u32 %s33, 1
        %s266 = smul.addr %s265, 32
        %s267 = scalar_lea.vmem [#allocation3], %s266
        // Predicated region
        $region49: #{tpu_custom_call.1} parent=47 // pred_check
          %p268 = pneg %p46
        $region50: #{tpu_custom_call.1} parent=47 // pred_check_branch
          %270 = sbr.rel (%p268) target = $region52
        $region51: #{tpu_custom_call.1} parent=47 // pred_region
          %271 = dma.done %s264, 512
        $region52: #{tpu_custom_call.1} parent=47 // pred_fallthru
          _
        %s272 = sand.u32 %s33, 1
        %s273 = scalar_lea.sflag [#allocation4], %s272
        %s274 = sand.u32 %s33, 1
        %s275 = smul.addr %s274, 32
        %s276 = scalar_lea.vmem [#allocation3], %s275
        %p277 = pneg %p46
        %p278 = pneg %p43
        %p279 = pneg %p67
        %p280 = pneg %p64
        %p281 = pneg %p88
        %p282 = pneg %p85
        %p283 = pneg %p109
        %p284 = pneg %p106
        %p285 = pneg %p130
        %p286 = pneg %p127
        %p287 = pneg %p151
        %p288 = pneg %p148
        %p289 = pneg %p172
        %p290 = pneg %p169
        %p291 = pneg %p198
        %p292 = pneg %p195
        %s293 = sand.u32 %s185, 1
        %s294 = scalar_lea.sflag [#allocation5], %s293
        %s295 = sand.u32 %s185, 1
        %s296 = smul.addr %s295, 32
        %s297 = scalar_lea.vmem [#allocation6], %s296
        %v298 = vld [vmem:[%s267] sm:$0xf]
        %v299 = vld [vmem:[%s267 + $0x4] sm:$0xf]
        %v300 = vld [vmem:[%s267 + $0x8] sm:$0xf]
        %v301 = vld [vmem:[%s267 + $0xc] sm:$0xf]
        %v302 = vld [vmem:[%s267 + $0x10] sm:$0xf]
        %v303 = vld [vmem:[%s267 + $0x14] sm:$0xf]
        %v304 = vld [vmem:[%s267 + $0x18] sm:$0xf]
        %v305 = vld [vmem:[%s267 + $0x1c] sm:$0xf]
        %v306 = vunpack.c.l.bf16 %v298
        %v307 = vunpack.c.l.bf16 %v299
        %v308 = vunpack.c.l.bf16 %v300
        %v309 = vunpack.c.l.bf16 %v301
        %v310 = vunpack.c.l.bf16 %v302
        %v311 = vunpack.c.l.bf16 %v303
        %v312 = vunpack.c.l.bf16 %v304
        %v313 = vunpack.c.l.bf16 %v305
        %v314 = vld [vmem:[%s1] sm:$0xff]
        %v315 = vld [vmem:[%s1 + $0x8] sm:$0xff]
        %v316 = vld [vmem:[%s1 + $0x10] sm:$0xff]
        %v317 = vld [vmem:[%s1 + $0x18] sm:$0xff]
        %v318 = vld [vmem:[%s1 + $0x20] sm:$0xff]
        %v319 = vld [vmem:[%s1 + $0x28] sm:$0xff]
        %v320 = vld [vmem:[%s1 + $0x30] sm:$0xff]
        %v321 = vld [vmem:[%s1 + $0x38] sm:$0xff]
        %v322 = vld [vmem:[%s1 + $0x40] sm:$0xff]
        %v323 = vld [vmem:[%s1 + $0x48] sm:$0xff]
        %v324 = vld [vmem:[%s1 + $0x50] sm:$0xff]
        %v325 = vld [vmem:[%s1 + $0x58] sm:$0xff]
        %v326 = vld [vmem:[%s1 + $0x60] sm:$0xff]
        %v327 = vld [vmem:[%s1 + $0x68] sm:$0xff]
        %v328 = vld [vmem:[%s1 + $0x70] sm:$0xff]
        %v329 = vld [vmem:[%s1 + $0x78] sm:$0xff]
        %s330 = sld [smem:[#allocation2]]
        %v331 = vstv %s330
        %332 = vmatprep.subr.mxu0 0.0
        %333 = vmatpush1.msra.mxu0 %v314
        %334 = vmatprep.subr.mxu0 0.0
        %335 = vmatpush1.msra.mxu0 %v315
        %336 = vmatprep.subr.mxu0 0.0
        %337 = vmatpush1.msra.mxu0 %v316
        %338 = vmatprep.subr.mxu0 0.0
        %339 = vmatpush1.msra.mxu0 %v317
        %340 = vmatprep.subr.mxu0 0.0
        %341 = vmatpush1.msra.mxu0 %v318
        %342 = vmatprep.subr.mxu0 0.0
        %343 = vmatpush1.msra.mxu0 %v319
        %344 = vmatprep.subr.mxu0 0.0
        %345 = vmatpush1.msra.mxu0 %v320
        %346 = vmatprep.subr.mxu0 0.0
        %347 = vmatpush1.msra.mxu0 %v321
        %348 = vmatprep.subr.mxu0 0.0
        %349 = vmatpush1.msra.mxu0 %v322
        %350 = vmatprep.subr.mxu0 0.0
        %351 = vmatpush1.msra.mxu0 %v323
        %352 = vmatprep.subr.mxu0 0.0
        %353 = vmatpush1.msra.mxu0 %v324
        %354 = vmatprep.subr.mxu0 0.0
        %355 = vmatpush1.msra.mxu0 %v325
        %356 = vmatprep.subr.mxu0 0.0
        %357 = vmatpush1.msra.mxu0 %v326
        %358 = vmatprep.subr.mxu0 0.0
        %359 = vmatpush1.msra.mxu0 %v327
        %360 = vmatprep.subr.mxu0 0.0
        %361 = vmatpush1.msra.mxu0 %v328
        %362 = vmatprep.subr.mxu0 0.0
        %363 = vmatpush1.msra.mxu0 %v329
        %364 = vmatprep.subr.mxu0 0.0
        %365 = vmatpush1.msra.mxu0 0.0
        %366 = vmatprep.subr.mxu0 0.0
        %367 = vmatpush1.msra.mxu0 0.0
        %368 = vmatprep.subr.mxu0 0.0
        %369 = vmatpush1.msra.mxu0 0.0
        %370 = vmatprep.subr.mxu0 0.0
        %371 = vmatpush1.msra.mxu0 0.0
        %372 = vmatprep.subr.mxu0 0.0
        %373 = vmatpush1.msra.mxu0 0.0
        %374 = vmatprep.subr.mxu0 0.0
        %375 = vmatpush1.msra.mxu0 0.0
        %376 = vmatprep.subr.mxu0 0.0
        %377 = vmatpush1.msra.mxu0 0.0
        %378 = vmatprep.subr.mxu0 0.0
        %379 = vmatpush1.msra.mxu0 0.0
        %380 = vmatprep.subr.mxu0 0.0
        %381 = vmatpush1.msra.mxu0 0.0
        %382 = vmatprep.subr.mxu0 0.0
        %383 = vmatpush1.msra.mxu0 0.0
        %384 = vmatprep.subr.mxu0 0.0
        %385 = vmatpush1.msra.mxu0 0.0
        %386 = vmatprep.subr.mxu0 0.0
        %387 = vmatpush1.msra.mxu0 0.0
        %388 = vmatprep.subr.mxu0 0.0
        %389 = vmatpush1.msra.mxu0 0.0
        %390 = vmatprep.subr.mxu0 0.0
        %391 = vmatpush1.msra.mxu0 0.0
        %392 = vmatprep.subr.mxu0 0.0
        %393 = vmatpush1.msra.mxu0 0.0
        %394 = vmatprep.subr.mxu0 0.0
        %395 = vmatpush1.msra.mxu0 0.0
        %396 = vmatprep.mubr.f32.mxu0 0.0
        %397 = vmatmul.mubr.f32.gmra.mrb[0].mxu0 %v306
        %v398 = vpop.f32.mrb[0].mxu0
        %v399 = vadd.f32 %v331, %v398
        %v400 = vpop.f32.mrb[0].mxu0
        %401 = vmatprep.mubr.f32.mxu0 0.0
        %402 = vmatmul.mubr.f32.gmra.mrb[0].mxu0 %v307
        %v403 = vpop.f32.mrb[0].mxu0
        %v404 = vadd.f32 %v331, %v403
        %v405 = vpop.f32.mrb[0].mxu0
        %406 = vmatprep.mubr.f32.mxu0 0.0
        %407 = vmatmul.mubr.f32.gmra.mrb[0].mxu0 %v308
        %v408 = vpop.f32.mrb[0].mxu0
        %v409 = vadd.f32 %v331, %v408
        %v410 = vpop.f32.mrb[0].mxu0
        %411 = vmatprep.mubr.f32.mxu0 0.0
        %412 = vmatmul.mubr.f32.gmra.mrb[0].mxu0 %v309
        %v413 = vpop.f32.mrb[0].mxu0
        %v414 = vadd.f32 %v331, %v413
        %v415 = vpop.f32.mrb[0].mxu0
        %416 = vmatprep.mubr.f32.mxu0 0.0
        %417 = vmatmul.mubr.f32.gmra.mrb[0].mxu0 %v310
        %v418 = vpop.f32.mrb[0].mxu0
        %v419 = vadd.f32 %v331, %v418
        %v420 = vpop.f32.mrb[0].mxu0
        %421 = vmatprep.mubr.f32.mxu0 0.0
        %422 = vmatmul.mubr.f32.gmra.mrb[0].mxu0 %v311
        %v423 = vpop.f32.mrb[0].mxu0
        %v424 = vadd.f32 %v331, %v423
        %v425 = vpop.f32.mrb[0].mxu0
        %426 = vmatprep.mubr.f32.mxu0 0.0
        %427 = vmatmul.mubr.f32.gmra.mrb[0].mxu0 %v312
        %v428 = vpop.f32.mrb[0].mxu0
        %v429 = vadd.f32 %v331, %v428
        %v430 = vpop.f32.mrb[0].mxu0
        %431 = vmatprep.mubr.f32.mxu0 0.0
        %432 = vmatmul.mubr.f32.gmra.mrb[0].mxu0 %v313
        %v433 = vpop.f32.mrb[0].mxu0
        %v434 = vadd.f32 %v331, %v433
        %v435 = vpop.f32.mrb[0].mxu0
        %436 = vdwg.mxu0
        %v437 = vxor.u32 %v399, 2147483648
        %v438 = vxor.u32 %v404, 2147483648
        %v439 = vxor.u32 %v409, 2147483648
        %v440 = vxor.u32 %v414, 2147483648
        %v441 = vxor.u32 %v419, 2147483648
        %v442 = vxor.u32 %v424, 2147483648
        %v443 = vxor.u32 %v429, 2147483648
        %v444 = vxor.u32 %v434, 2147483648
        %v445 = vmul.f32 %v437, 1.442695
        %v446 = vpow.pop %v445
        %v447 = vmul.f32 %v438, 1.442695
        %v448 = vpow.pop %v447
        %v449 = vmul.f32 %v439, 1.442695
        %v450 = vpow.pop %v449
        %v451 = vmul.f32 %v440, 1.442695
        %v452 = vpow.pop %v451
        %v453 = vmul.f32 %v441, 1.442695
        %v454 = vpow.pop %v453
        %v455 = vmul.f32 %v442, 1.442695
        %v456 = vpow.pop %v455
        %v457 = vmul.f32 %v443, 1.442695
        %v458 = vpow.pop %v457
        %v459 = vmul.f32 %v444, 1.442695
        %v460 = vpow.pop %v459
        %v461 = vadd.f32 %v446, 1.0
        %v462 = vadd.f32 %v448, 1.0
        %v463 = vadd.f32 %v450, 1.0
        %v464 = vadd.f32 %v452, 1.0
        %v465 = vadd.f32 %v454, 1.0
        %v466 = vadd.f32 %v456, 1.0
        %v467 = vadd.f32 %v458, 1.0
        %v468 = vadd.f32 %v460, 1.0
        %v469 = vrcp.pop %v461
        %v470 = vmul.f32 1.0, %v469
        %v471 = vrcp.pop %v462
        %v472 = vmul.f32 1.0, %v471
        %v473 = vrcp.pop %v463
        %v474 = vmul.f32 1.0, %v473
        %v475 = vrcp.pop %v464
        %v476 = vmul.f32 1.0, %v475
        %v477 = vrcp.pop %v465
        %v478 = vmul.f32 1.0, %v477
        %v479 = vrcp.pop %v466
        %v480 = vmul.f32 1.0, %v479
        %v481 = vrcp.pop %v467
        %v482 = vmul.f32 1.0, %v481
        %v483 = vrcp.pop %v468
        %v484 = vmul.f32 1.0, %v483
        %v485 = vadd.f32 %v306, %v307
        %v486 = vadd.f32 %v485, %v308
        %v487 = vadd.f32 %v486, %v309
        %v488 = vadd.f32 %v487, %v310
        %v489 = vadd.f32 %v488, %v311
        %v490 = vadd.f32 %v489, %v312
        %v491 = vadd.f32 %v490, %v313
        %v492 = vrot.slane %v491, 4
        %v493 = vadd.f32 %v491, %v492
        %v494 = vrot.slane %v493, 2
        %v495 = vadd.f32 %v493, %v494
        %v496 = vrot.slane %v495, 1
        %v497 = vadd.f32 %v495, %v496
        %v498 = vmul.f32 %v497, 0.015625
        %v499 = vld [vmem:[%s3] sm:$0xff]
        %v500 = vld [vmem:[%s3 + $0x8] sm:$0xff]
        %v501 = vld [vmem:[%s3 + $0x10] sm:$0xff]
        %v502 = vld [vmem:[%s3 + $0x18] sm:$0xff]
        %v503 = vld [vmem:[%s3 + $0x20] sm:$0xff]
        %v504 = vld [vmem:[%s3 + $0x28] sm:$0xff]
        %v505 = vld [vmem:[%s3 + $0x30] sm:$0xff]
        %v506 = vld [vmem:[%s3 + $0x38] sm:$0xff]
        %v507 = vld [vmem:[%s3 + $0x40] sm:$0xff]
        %v508 = vld [vmem:[%s3 + $0x48] sm:$0xff]
        %v509 = vld [vmem:[%s3 + $0x50] sm:$0xff]
        %v510 = vld [vmem:[%s3 + $0x58] sm:$0xff]
        %v511 = vld [vmem:[%s3 + $0x60] sm:$0xff]
        %v512 = vld [vmem:[%s3 + $0x68] sm:$0xff]
        %v513 = vld [vmem:[%s3 + $0x70] sm:$0xff]
        %v514 = vld [vmem:[%s3 + $0x78] sm:$0xff]
        %v515 = vld [vmem:[%s4] sm:$0x1]
        %516 = vmatprep.subr.mxu0 0.0
        %517 = vmatpush1.msra.mxu0 %v499
        %518 = vmatprep.subr.mxu0 0.0
        %519 = vmatpush1.msra.mxu0 %v500
        %520 = vmatprep.subr.mxu0 0.0
        %521 = vmatpush1.msra.mxu0 %v501
        %522 = vmatprep.subr.mxu0 0.0
        %523 = vmatpush1.msra.mxu0 %v502
        %524 = vmatprep.subr.mxu0 0.0
        %525 = vmatpush1.msra.mxu0 %v503
        %526 = vmatprep.subr.mxu0 0.0
        %527 = vmatpush1.msra.mxu0 %v504
        %528 = vmatprep.subr.mxu0 0.0
        %529 = vmatpush1.msra.mxu0 %v505
        %530 = vmatprep.subr.mxu0 0.0
        %531 = vmatpush1.msra.mxu0 %v506
        %532 = vmatprep.subr.mxu0 0.0
        %533 = vmatpush1.msra.mxu0 %v507
        %534 = vmatprep.subr.mxu0 0.0
        %535 = vmatpush1.msra.mxu0 %v508
        %536 = vmatprep.subr.mxu0 0.0
        %537 = vmatpush1.msra.mxu0 %v509
        %538 = vmatprep.subr.mxu0 0.0
        %539 = vmatpush1.msra.mxu0 %v510
        %540 = vmatprep.subr.mxu0 0.0
        %541 = vmatpush1.msra.mxu0 %v511
        %542 = vmatprep.subr.mxu0 0.0
        %543 = vmatpush1.msra.mxu0 %v512
        %544 = vmatprep.subr.mxu0 0.0
        %545 = vmatpush1.msra.mxu0 %v513
        %546 = vmatprep.subr.mxu0 0.0
        %547 = vmatpush1.msra.mxu0 %v514
        %548 = vmatprep.subr.mxu0 0.0
        %549 = vmatpush1.msra.mxu0 0.0
        %550 = vmatprep.subr.mxu0 0.0
        %551 = vmatpush1.msra.mxu0 0.0
        %552 = vmatprep.subr.mxu0 0.0
        %553 = vmatpush1.msra.mxu0 0.0
        %554 = vmatprep.subr.mxu0 0.0
        %555 = vmatpush1.msra.mxu0 0.0
        %556 = vmatprep.subr.mxu0 0.0
        %557 = vmatpush1.msra.mxu0 0.0
        %558 = vmatprep.subr.mxu0 0.0
        %559 = vmatpush1.msra.mxu0 0.0
        %560 = vmatprep.subr.mxu0 0.0
        %561 = vmatpush1.msra.mxu0 0.0
        %562 = vmatprep.subr.mxu0 0.0
        %563 = vmatpush1.msra.mxu0 0.0
        %564 = vmatprep.subr.mxu0 0.0
        %565 = vmatpush1.msra.mxu0 0.0
        %566 = vmatprep.subr.mxu0 0.0
        %567 = vmatpush1.msra.mxu0 0.0
        %568 = vmatprep.subr.mxu0 0.0
        %569 = vmatpush1.msra.mxu0 0.0
        %570 = vmatprep.subr.mxu0 0.0
        %571 = vmatpush1.msra.mxu0 0.0
        %572 = vmatprep.subr.mxu0 0.0
        %573 = vmatpush1.msra.mxu0 0.0
        %574 = vmatprep.subr.mxu0 0.0
        %575 = vmatpush1.msra.mxu0 0.0
        %576 = vmatprep.subr.mxu0 0.0
        %577 = vmatpush1.msra.mxu0 0.0
        %578 = vmatprep.subr.mxu0 0.0
        %579 = vmatpush1.msra.mxu0 0.0
        %580 = vmatprep.mubr.f32.mxu0 0.0
        %581 = vmatmul.mubr.f32.gmra.mrb[0].mxu0 %v498
        %v582 = vpop.f32.mrb[0].mxu0
        %v583 = vadd.f32 %v515, %v582
        %v584 = vpop.f32.mrb[0].mxu0
        %585 = vdwg.mxu0
        %v586 = vmax.f32 %v583, 0.0
        %v587 = vld [vmem:[%s5] sm:$0xff]
        %v588 = vld [vmem:[%s5 + $0x8] sm:$0xff]
        %v589 = vld [vmem:[%s6] sm:$0x1]
        %vm590 = vcmask 130048
        %v592 = vsel %vm590, %v586, 0
        %594 = vmatprep.subr.mxu0 0.0
        %595 = vmatpush1.msra.mxu0 %v587
        %596 = vmatprep.subr.mxu0 0.0
        %597 = vmatpush1.msra.mxu0 %v588
        %598 = vmatprep.subr.mxu0 0.0
        %599 = vmatpush1.msra.mxu0 0.0
        %600 = vmatprep.subr.mxu0 0.0
        %601 = vmatpush1.msra.mxu0 0.0
        %602 = vmatprep.subr.mxu0 0.0
        %603 = vmatpush1.msra.mxu0 0.0
        %604 = vmatprep.subr.mxu0 0.0
        %605 = vmatpush1.msra.mxu0 0.0
        %606 = vmatprep.subr.mxu0 0.0
        %607 = vmatpush1.msra.mxu0 0.0
        %608 = vmatprep.subr.mxu0 0.0
        %609 = vmatpush1.msra.mxu0 0.0
        %610 = vmatprep.subr.mxu0 0.0
        %611 = vmatpush1.msra.mxu0 0.0
        %612 = vmatprep.subr.mxu0 0.0
        %613 = vmatpush1.msra.mxu0 0.0
        %614 = vmatprep.subr.mxu0 0.0
        %615 = vmatpush1.msra.mxu0 0.0
        %616 = vmatprep.subr.mxu0 0.0
        %617 = vmatpush1.msra.mxu0 0.0
        %618 = vmatprep.subr.mxu0 0.0
        %619 = vmatpush1.msra.mxu0 0.0
        %620 = vmatprep.subr.mxu0 0.0
        %621 = vmatpush1.msra.mxu0 0.0
        %622 = vmatprep.subr.mxu0 0.0
        %623 = vmatpush1.msra.mxu0 0.0
        %624 = vmatprep.subr.mxu0 0.0
        %625 = vmatpush1.msra.mxu0 0.0
        %626 = vmatprep.subr.mxu0 0.0
        %627 = vmatpush1.msra.mxu0 0.0
        %628 = vmatprep.subr.mxu0 0.0
        %629 = vmatpush1.msra.mxu0 0.0
        %630 = vmatprep.subr.mxu0 0.0
        %631 = vmatpush1.msra.mxu0 0.0
        %632 = vmatprep.subr.mxu0 0.0
        %633 = vmatpush1.msra.mxu0 0.0
        %634 = vmatprep.subr.mxu0 0.0
        %635 = vmatpush1.msra.mxu0 0.0
        %636 = vmatprep.subr.mxu0 0.0
        %637 = vmatpush1.msra.mxu0 0.0
        %638 = vmatprep.subr.mxu0 0.0
        %639 = vmatpush1.msra.mxu0 0.0
        %640 = vmatprep.subr.mxu0 0.0
        %641 = vmatpush1.msra.mxu0 0.0
        %642 = vmatprep.subr.mxu0 0.0
        %643 = vmatpush1.msra.mxu0 0.0
        %644 = vmatprep.subr.mxu0 0.0
        %645 = vmatpush1.msra.mxu0 0.0
        %646 = vmatprep.subr.mxu0 0.0
        %647 = vmatpush1.msra.mxu0 0.0
        %648 = vmatprep.subr.mxu0 0.0
        %649 = vmatpush1.msra.mxu0 0.0
        %650 = vmatprep.subr.mxu0 0.0
        %651 = vmatpush1.msra.mxu0 0.0
        %652 = vmatprep.subr.mxu0 0.0
        %653 = vmatpush1.msra.mxu0 0.0
        %654 = vmatprep.subr.mxu0 0.0
        %655 = vmatpush1.msra.mxu0 0.0
        %656 = vmatprep.subr.mxu0 0.0
        %657 = vmatpush1.msra.mxu0 0.0
        %658 = vmatprep.mubr.f32.mxu0 0.0
        %659 = vmatmul.mubr.f32.gmra.mrb[0].mxu0 %v592
        %v660 = vpop.f32.mrb[0].mxu0
        %v661 = vadd.f32 %v589, %v660
        %v662 = vpop.f32.mrb[0].mxu0
        %663 = vdwg.mxu0
        %v664 = vxor.u32 %v661, 2147483648
        %v665 = vmul.f32 %v664, 1.442695
        %v666 = vpow.pop %v665
        %v667 = vadd.f32 %v666, 1.0
        %v668 = vrcp.pop %v667
        %v669 = vmul.f32 1.0, %v668
        %v670 = vlaneseq
        %v671 = vshrl.u32 %v670, 7
        %v672 = vsub.s32 0, %v671
        %v673 = vrot.slane %v669, %v672
        %v674 = vadd.f32 %v470, %v673
        %v675 = vadd.f32 %v472, %v673
        %v676 = vadd.f32 %v474, %v673
        %v677 = vadd.f32 %v476, %v673
        %v678 = vadd.f32 %v478, %v673
        %v679 = vadd.f32 %v480, %v673
        %v680 = vadd.f32 %v482, %v673
        %v681 = vadd.f32 %v484, %v673
        %v682 = vmul.f32 %v306, %v674
        %v683 = vmul.f32 %v307, %v675
        %v684 = vmul.f32 %v308, %v676
        %v685 = vmul.f32 %v309, %v677
        %v686 = vmul.f32 %v310, %v678
        %v687 = vmul.f32 %v311, %v679
        %v688 = vmul.f32 %v312, %v680
        %v689 = vmul.f32 %v313, %v681
        %v690 = vpack.c.bf16 %v683, %v682
        %v691 = vpack.c.bf16 %v685, %v684
        %v692 = vpack.c.bf16 %v687, %v686
        %v693 = vpack.c.bf16 %v689, %v688
        %v698 = vunpack.c.l.b16 %v690
        %v699 = vunpack.c.h.b16 %v690
        %v700 = vunpack.c.l.b16 %v691
        %v701 = vunpack.c.h.b16 %v691
        %v702 = vunpack.c.l.b16 %v692
        %v703 = vunpack.c.h.b16 %v692
        %v704 = vunpack.c.l.b16 %v693
        %v705 = vunpack.c.h.b16 %v693
        %v706 = vpack.c.b16 %v698, %v698
        %v707 = vpack.c.b16 %v699, %v699
        %v708 = vpack.c.b16 %v700, %v700
        %v709 = vpack.c.b16 %v701, %v701
        %v710 = vpack.c.b16 %v702, %v702
        %v711 = vpack.c.b16 %v703, %v703
        %v712 = vpack.c.b16 %v704, %v704
        %v713 = vpack.c.b16 %v705, %v705
        %722 = vst [vmem:[%s297] sm:$0xf] %v706
        %723 = vst [vmem:[%s297 + $0x4] sm:$0xf] %v707
        %724 = vst [vmem:[%s297 + $0x8] sm:$0xf] %v708
        %725 = vst [vmem:[%s297 + $0xc] sm:$0xf] %v709
        %726 = vst [vmem:[%s297 + $0x10] sm:$0xf] %v710
        %727 = vst [vmem:[%s297 + $0x14] sm:$0xf] %v711
        %728 = vst [vmem:[%s297 + $0x18] sm:$0xf] %v712
        %729 = vst [vmem:[%s297 + $0x1c] sm:$0xf] %v713
        %s730 = sand.u32 %s185, 1
        %s731 = scalar_lea.sflag [#allocation5], %s730
        %s732 = sand.u32 %s185, 1
        %s733 = smul.addr %s732, 32
        %s734 = scalar_lea.vmem [#allocation6], %s733
        // Predicated region
        $region53: #{tpu_custom_call.1} parent=47 // pred_check
          %p735 = pneg %p195
        $region54: #{tpu_custom_call.1} parent=47 // pred_check_branch
          %737 = sbr.rel (%p735) target = $region56
        $region55: #{tpu_custom_call.1} parent=47 // pred_region
          %s739 = ssub.s32 512, 512
          %740 = vsyncadd %s731, %s739
          %s741 = smul.addr %s25, 8
          %s742 = smul.addr %s741, 64
          %s743 = scalar_lea.hbm %s7, %s742
          %s744 = sshll.u32 %s734, 4
          %s745 = int_to_ptr.vmem [resolvable:$true] %s744
          %750 = dma.vmem_to_hbm [thread:$0]  %s745, 512, %s743, %s731, 64, 64, 4
        $region56: #{tpu_custom_call.1} parent=47 // pred_fallthru
          _
      $region48: #{tpu_custom_call.1} parent=5 // pred_fallthru
        _
      %p751 = scmp.le.s32.totalorder 2, %s20
      // Predicated region
      $region57: #{tpu_custom_call.1} parent=5 // pred_check
        %p752 = pneg %p751
      $region58: #{tpu_custom_call.1} parent=5 // pred_check_branch
        %754 = sbr.rel (%p752) target = $region60
      $region59: #{tpu_custom_call.1} parent=5 // pred_region
        %s755 = ssub.s32 %s20, 2
        // Predicated region
        $region61: #{tpu_custom_call.1} parent=59 // pred_check
          %p756 = pneg %p201
        $region62: #{tpu_custom_call.1} parent=59 // pred_check_branch
          %758 = sbr.rel (%p756) target = $region64
        $region63: #{tpu_custom_call.1} parent=59 // pred_region
          %s759 = sand.u32 %s186, 1
          %s760 = scalar_lea.sflag [#allocation5], %s759
          %s761 = sand.u32 %s186, 1
          %s762 = smul.addr %s761, 32
          %s763 = scalar_lea.vmem [#allocation6], %s762
          %764 = dma.done %s760, 512
        $region64: #{tpu_custom_call.1} parent=59 // pred_fallthru
          _
      $region60: #{tpu_custom_call.1} parent=5 // pred_fallthru
        _
    $region6: #{tpu_custom_call.1} parent=1 // loop_footer
      %s24 = sadd.s32 1, %s20
    $region7: #{tpu_custom_call.1} parent=1 // loop_footer_branch
      %19 = sbr.rel target = $region3
    $region8: #{tpu_custom_call.1} parent=1 // loop_exit
      _
    %765 = vsyncpa [#allocation4], 1
    %s766 = scalar_lea.sflag [#allocation4], 1
    %767 = vsyncpa %s766, 1
    %768 = vsyncpa [#allocation5], 1
    %s769 = scalar_lea.sflag [#allocation5], 1
    %770 = vsyncpa %s769, 1

// kernel: tpu_custom_call.1
$region0: #{tpu_custom_call.1}
  #allocation0 [shape = 'u32[]', space=smem, size = 0x4, offset = 0x4, fixed_abs, tag = 'smem constant byte address 0x4 - core index']
  #allocation1 [shape = 'u32[144,128]{1,0:T(1,128)}', space=vmem, size = 0x12000, scoped, tag = 'internal scratch']
  #allocation2 [shape = 'f32[1]{0:T(128)S(6)}', space=smem, size = 0x200, scoped, tag = 'scoped memory for tpu_custom_call.1']
  %s0 = inlined_call_operand.hbm [shape: bf16[2,64,128], index: 0, kind: input, shape index: {}, may-alias: {0,7}]
  %s1 = inlined_call_operand.vmem [shape: f32[128,128], index: 1, kind: input, shape index: {}]
  %s2 = inlined_call_operand.<no memory space> [shape: f32[1], index: 2, kind: input, shape index: {}]
  %s3 = inlined_call_operand.vmem [shape: f32[128,16], index: 3, kind: input, shape index: {}]
  %s4 = inlined_call_operand.vmem [shape: f32[1,16], index: 4, kind: input, shape index: {}]
  %s5 = inlined_call_operand.vmem [shape: f32[16,128], index: 5, kind: input, shape index: {}]
  %s6 = inlined_call_operand.vmem [shape: f32[1,128], index: 6, kind: input, shape index: {}]
  %s7 = inlined_call_operand.hbm [shape: bf16[2,64,128], index: 7, kind: output, shape index: {}, may-alias: {0,7}]
  %s8 = sld [smem:[#allocation0]]
  $region65: #{tpu_custom_call.1} parent=0
    _
  %s10 = ssub.s32 1, %s8
  %s11 = scalar_select 0, %s10, %s8
  %12 = sst [smem:[#allocation2]] %s2
  $region1: #{tpu_custom_call.1} parent=0
    #allocation3 [shape = 'u8[32768]{0}', space=vmem, size = 0x8000, scoped, tag = 'input window, operand 0']
    #allocation4 [shape = 's32[2]{0}', space=sflag, size = 0x8, scoped, tag = 'scoped memory for tpu_custom_call.1']
    #allocation5 [shape = 's32[2]{0}', space=sflag, size = 0x8, scoped, tag = 'scoped memory for tpu_custom_call.1']
    #allocation6 [shape = 'u8[32768]{0}', space=vmem, size = 0x8000, scoped, tag = 'output window, operand 0']
    %13 = vsyncpa [#allocation4], 0
    %s14 = scalar_lea.sflag [#allocation4], 1
    %15 = vsyncpa %s14, 0
    %16 = vsyncpa [#allocation5], 0
    %s17 = scalar_lea.sflag [#allocation5], 1
    %18 = vsyncpa %s17, 0
    loop: start=0, step=1, limit=4
    $region2: #{tpu_custom_call.1} parent=1 // loop_pre_header
      _
    $region3: #{tpu_custom_call.1} parent=1 // loop_header
      %s20 = sphi 0, %s24
      %p21 = scmp.ge.s32.totalorder %s20, 4
      %s30 = sphi 0, %s32
      %s33 = sphi 0, %s30
      %s34 = sphi 0, %s33
      %s50 = sphi 0, %s34
      %s54 = sphi 0, %s54
      %s56 = sphi 0, %s54
      %s57 = sphi 0, %s56
      %s71 = sphi 0, %s57
      %s75 = sphi 0, %s75
      %s77 = sphi 0, %s75
      %s78 = sphi 0, %s77
      %s92 = sphi 0, %s78
      %s96 = sphi 0, %s96
      %s98 = sphi 0, %s96
      %s99 = sphi 0, %s98
      %s113 = sphi 0, %s99
      %s117 = sphi 0, %s117
      %s119 = sphi 0, %s117
      %s120 = sphi 0, %s119
      %s134 = sphi 0, %s120
      %s138 = sphi 0, %s138
      %s140 = sphi 0, %s138
      %s141 = sphi 0, %s140
      %s155 = sphi 0, %s141
      %s159 = sphi 0, %s159
      %s161 = sphi 0, %s159
      %s162 = sphi 0, %s161
      %s176 = sphi 0, %s162
      %s182 = sphi 0, %s184
      %s185 = sphi 0, %s182
      %s186 = sphi 0, %s185
      %s202 = sphi 0, %s186
    $region4: #{tpu_custom_call.1} parent=1 // loop_header_branch
      %23 = sbr.rel (%p21) target = $region8
    $region5: #{tpu_custom_call.1} parent=1 // loop_body
      %s25 = ssub.s32 %s20, 1
      %s26 = ssub.s32 %s20, 2
      %s27 = sadd.s32 %s20, 1
      %s28 = ssub.s32 %s20, %s27
      %p29 = scmp.eq.s32.totalorder %s28, 0
      %s31 = sadd.s32 %s30, 1
      %s32 = scalar_select %p29, %s30, %s31
      %p35 = pneg %p29
      %p36 = scmp.eq.s32.totalorder %s20, 1
      %p37 = por %p35, %p36
      %p38 = scmp.ne.s32.totalorder %s30, %s33
      %p39 = scmp.eq.s32.totalorder %s20, 0
      %p40 = por %p38, %p39
      %p41 = scmp.ne.s32.totalorder %s30, %s33
      %p42 = scmp.eq.s32.totalorder %s25, 1
      %p43 = por %p41, %p42
      %p44 = scmp.ne.s32.totalorder %s33, %s34
      %p45 = scmp.eq.s32.totalorder %s25, 0
      %p46 = por %p44, %p45
      %p47 = scmp.ne.s32.totalorder %s33, %s34
      %p48 = scmp.eq.s32.totalorder %s26, 1
      %p49 = por %p47, %p48
      %p51 = scmp.ne.s32.totalorder %s34, %s50
      %p52 = scmp.eq.s32.totalorder %s26, 0
      %p53 = por %p51, %p52
      %s55 = sadd.s32 %s54, 1
      %p58 = scmp.eq.s32.totalorder %s20, 1
      %p59 = scmp.ne.s32.totalorder %s54, %s56
      %p60 = scmp.eq.s32.totalorder %s20, 0
      %p61 = por %p59, %p60
      %p62 = scmp.ne.s32.totalorder %s54, %s56
      %p63 = scmp.eq.s32.totalorder %s25, 1
      %p64 = por %p62, %p63
      %p65 = scmp.ne.s32.totalorder %s56, %s57
      %p66 = scmp.eq.s32.totalorder %s25, 0
      %p67 = por %p65, %p66
      %p68 = scmp.ne.s32.totalorder %s56, %s57
      %p69 = scmp.eq.s32.totalorder %s26, 1
      %p70 = por %p68, %p69
      %p72 = scmp.ne.s32.totalorder %s57, %s71
      %p73 = scmp.eq.s32.totalorder %s26, 0
      %p74 = por %p72, %p73
      %s76 = sadd.s32 %s75, 1
      %p79 = scmp.eq.s32.totalorder %s20, 1
      %p80 = scmp.ne.s32.totalorder %s75, %s77
      %p81 = scmp.eq.s32.totalorder %s20, 0
      %p82 = por %p80, %p81
      %p83 = scmp.ne.s32.totalorder %s75, %s77
      %p84 = scmp.eq.s32.totalorder %s25, 1
      %p85 = por %p83, %p84
      %p86 = scmp.ne.s32.totalorder %s77, %s78
      %p87 = scmp.eq.s32.totalorder %s25, 0
      %p88 = por %p86, %p87
      %p89 = scmp.ne.s32.totalorder %s77, %s78
      %p90 = scmp.eq.s32.totalorder %s26, 1
      %p91 = por %p89, %p90
      %p93 = scmp.ne.s32.totalorder %s78, %s92
      %p94 = scmp.eq.s32.totalorder %s26, 0
      %p95 = por %p93, %p94
      %s97 = sadd.s32 %s96, 1
      %p100 = scmp.eq.s32.totalorder %s20, 1
      %p101 = scmp.ne.s32.totalorder %s96, %s98
      %p102 = scmp.eq.s32.totalorder %s20, 0
      %p103 = por %p101, %p102
      %p104 = scmp.ne.s32.totalorder %s96, %s98
      %p105 = scmp.eq.s32.totalorder %s25, 1
      %p106 = por %p104, %p105
      %p107 = scmp.ne.s32.totalorder %s98, %s99
      %p108 = scmp.eq.s32.totalorder %s25, 0
      %p109 = por %p107, %p108
      %p110 = scmp.ne.s32.totalorder %s98, %s99
      %p111 = scmp.eq.s32.totalorder %s26, 1
      %p112 = por %p110, %p111
      %p114 = scmp.ne.s32.totalorder %s99, %s113
      %p115 = scmp.eq.s32.totalorder %s26, 0
      %p116 = por %p114, %p115
      %s118 = sadd.s32 %s117, 1
      %p121 = scmp.eq.s32.totalorder %s20, 1
      %p122 = scmp.ne.s32.totalorder %s117, %s119
      %p123 = scmp.eq.s32.totalorder %s20, 0
      %p124 = por %p122, %p123
      %p125 = scmp.ne.s32.totalorder %s117, %s119
      %p126 = scmp.eq.s32.totalorder %s25, 1
      %p127 = por %p125, %p126
      %p128 = scmp.ne.s32.totalorder %s119, %s120
      %p129 = scmp.eq.s32.totalorder %s25, 0
      %p130 = por %p128, %p129
      %p131 = scmp.ne.s32.totalorder %s119, %s120
      %p132 = scmp.eq.s32.totalorder %s26, 1
      %p133 = por %p131, %p132
      %p135 = scmp.ne.s32.totalorder %s120, %s134
      %p136 = scmp.eq.s32.totalorder %s26, 0
      %p137 = por %p135, %p136
      %s139 = sadd.s32 %s138, 1
      %p142 = scmp.eq.s32.totalorder %s20, 1
      %p143 = scmp.ne.s32.totalorder %s138, %s140
      %p144 = scmp.eq.s32.totalorder %s20, 0
      %p145 = por %p143, %p144
      %p146 = scmp.ne.s32.totalorder %s138, %s140
      %p147 = scmp.eq.s32.totalorder %s25, 1
      %p148 = por %p146, %p147
      %p149 = scmp.ne.s32.totalorder %s140, %s141
      %p150 = scmp.eq.s32.totalorder %s25, 0
      %p151 = por %p149, %p150
      %p152 = scmp.ne.s32.totalorder %s140, %s141
      %p153 = scmp.eq.s32.totalorder %s26, 1
      %p154 = por %p152, %p153
      %p156 = scmp.ne.s32.totalorder %s141, %s155
      %p157 = scmp.eq.s32.totalorder %s26, 0
      %p158 = por %p156, %p157
      %s160 = sadd.s32 %s159, 1
      %p163 = scmp.eq.s32.totalorder %s20, 1
      %p164 = scmp.ne.s32.totalorder %s159, %s161
      %p165 = scmp.eq.s32.totalorder %s20, 0
      %p166 = por %p164, %p165
      %p167 = scmp.ne.s32.totalorder %s159, %s161
      %p168 = scmp.eq.s32.totalorder %s25, 1
      %p169 = por %p167, %p168
      %p170 = scmp.ne.s32.totalorder %s161, %s162
      %p171 = scmp.eq.s32.totalorder %s25, 0
      %p172 = por %p170, %p171
      %p173 = scmp.ne.s32.totalorder %s161, %s162
      %p174 = scmp.eq.s32.totalorder %s26, 1
      %p175 = por %p173, %p174
      %p177 = scmp.ne.s32.totalorder %s162, %s176
      %p178 = scmp.eq.s32.totalorder %s26, 0
      %p179 = por %p177, %p178
      %s180 = ssub.s32 %s20, %s27
      %p181 = scmp.eq.s32.totalorder %s180, 0
      %s183 = sadd.s32 %s182, 1
      %s184 = scalar_select %p181, %s182, %s183
      %p187 = pneg %p181
      %p188 = scmp.eq.s32.totalorder %s20, 1
      %p189 = por %p187, %p188
      %p190 = scmp.ne.s32.totalorder %s182, %s185
      %p191 = scmp.eq.s32.totalorder %s20, 0
      %p192 = por %p190, %p191
      %p193 = scmp.ne.s32.totalorder %s182, %s185
      %p194 = scmp.eq.s32.totalorder %s25, 1
      %p195 = por %p193, %p194
      %p196 = scmp.ne.s32.totalorder %s185, %s186
      %p197 = scmp.eq.s32.totalorder %s25, 0
      %p198 = por %p196, %p197
      %p199 = scmp.ne.s32.totalorder %s185, %s186
      %p200 = scmp.eq.s32.totalorder %s26, 1
      %p201 = por %p199, %p200
      %p203 = scmp.ne.s32.totalorder %s186, %s202
      %p204 = scmp.eq.s32.totalorder %s26, 0
      %p205 = por %p203, %p204
      %p206 = scmp.le.s32.totalorder 1, %s20
      %p207 = scmp.lt.s32.totalorder %s20, 3
      %p208 = pnand %p206, %p207
      %p209 = pneg %p208
      // Predicated region
      $region9: #{tpu_custom_call.1} parent=5 // pred_check
        _
      $region10: #{tpu_custom_call.1} parent=5 // pred_check_branch
        %211 = sbr.rel (%p208) target = $region12
      $region11: #{tpu_custom_call.1} parent=5 // pred_region
        %s212 = ssub.s32 %s20, 1
        // Predicated region
        $region13: #{tpu_custom_call.1} parent=11 // pred_check
          %p213 = pneg %p67
        $region14: #{tpu_custom_call.1} parent=11 // pred_check_branch
          %215 = sbr.rel (%p213) target = $region16
        $region15: #{tpu_custom_call.1} parent=11 // pred_region
          _
        $region16: #{tpu_custom_call.1} parent=11 // pred_fallthru
          _
        // Predicated region
        $region17: #{tpu_custom_call.1} parent=11 // pred_check
          %p216 = pneg %p88
        $region18: #{tpu_custom_call.1} parent=11 // pred_check_branch
          %218 = sbr.rel (%p216) target = $region20
        $region19: #{tpu_custom_call.1} parent=11 // pred_region
          _
        $region20: #{tpu_custom_call.1} parent=11 // pred_fallthru
          _
        // Predicated region
        $region21: #{tpu_custom_call.1} parent=11 // pred_check
          %p219 = pneg %p109
        $region22: #{tpu_custom_call.1} parent=11 // pred_check_branch
          %221 = sbr.rel (%p219) target = $region24
        $region23: #{tpu_custom_call.1} parent=11 // pred_region
          _
        $region24: #{tpu_custom_call.1} parent=11 // pred_fallthru
          _
        // Predicated region
        $region25: #{tpu_custom_call.1} parent=11 // pred_check
          %p222 = pneg %p130
        $region26: #{tpu_custom_call.1} parent=11 // pred_check_branch
          %224 = sbr.rel (%p222) target = $region28
        $region27: #{tpu_custom_call.1} parent=11 // pred_region
          _
        $region28: #{tpu_custom_call.1} parent=11 // pred_fallthru
          _
        // Predicated region
        $region29: #{tpu_custom_call.1} parent=11 // pred_check
          %p225 = pneg %p151
        $region30: #{tpu_custom_call.1} parent=11 // pred_check_branch
          %227 = sbr.rel (%p225) target = $region32
        $region31: #{tpu_custom_call.1} parent=11 // pred_region
          _
        $region32: #{tpu_custom_call.1} parent=11 // pred_fallthru
          _
        // Predicated region
        $region33: #{tpu_custom_call.1} parent=11 // pred_check
          %p228 = pneg %p172
        $region34: #{tpu_custom_call.1} parent=11 // pred_check_branch
          %230 = sbr.rel (%p228) target = $region36
        $region35: #{tpu_custom_call.1} parent=11 // pred_region
          _
        $region36: #{tpu_custom_call.1} parent=11 // pred_fallthru
          _
      $region12: #{tpu_custom_call.1} parent=5 // pred_fallthru
        _
      %p231 = scmp.lt.s32.totalorder %s20, 2
      // Predicated region
      $region37: #{tpu_custom_call.1} parent=5 // pred_check
        %p232 = pneg %p231
      $region38: #{tpu_custom_call.1} parent=5 // pred_check_branch
        %234 = sbr.rel (%p232) target = $region40
      $region39: #{tpu_custom_call.1} parent=5 // pred_region
        // Predicated region
        $region41: #{tpu_custom_call.1} parent=39 // pred_check
          %p235 = pneg %p40
        $region42: #{tpu_custom_call.1} parent=39 // pred_check_branch
          %237 = sbr.rel (%p235) target = $region44
        $region43: #{tpu_custom_call.1} parent=39 // pred_region
          %s238 = sand.u32 %s30, 1
          %s239 = scalar_lea.sflag [#allocation4], %s238
          %s240 = sand.u32 %s30, 1
          %s241 = smul.addr %s240, 32
          %s242 = scalar_lea.vmem [#allocation3], %s241
          %s244 = ssub.s32 512, 512
          %245 = vsyncadd %s239, %s244
          %s246 = smul.addr %s20, 8
          %s247 = smul.addr %s246, 64
          %s248 = scalar_lea.hbm %s0, %s247
          %s249 = sshll.u32 %s242, 4
          %s250 = int_to_ptr.vmem [resolvable:$true] %s249
          %255 = dma.hbm_to_vmem [thread:$0]  %s248, 512, %s250, %s239, 64, 64, 4
        $region44: #{tpu_custom_call.1} parent=39 // pred_fallthru
          _
      $region40: #{tpu_custom_call.1} parent=5 // pred_fallthru
        _
      %p256 = scmp.le.s32.totalorder 1, %s20
      %p257 = scmp.lt.s32.totalorder %s20, 3
      %p258 = pnand %p256, %p257
      %p259 = pneg %p258
      // Predicated region
      $region45: #{tpu_custom_call.1} parent=5 // pred_check
        _
      $region46: #{tpu_custom_call.1} parent=5 // pred_check_branch
        %261 = sbr.rel (%p258) target = $region48
      $region47: #{tpu_custom_call.1} parent=5 // pred_region
        %s262 = ssub.s32 %s20, 1
        %s263 = sand.u32 %s33, 1
        %s264 = scalar_lea.sflag [#allocation4], %s263
        %s265 = sand.u32 %s33, 1
        %s266 = smul.addr %s265, 32
        %s267 = scalar_lea.vmem [#allocation3], %s266
        // Predicated region
        $region49: #{tpu_custom_call.1} parent=47 // pred_check
          %p268 = pneg %p46
        $region50: #{tpu_custom_call.1} parent=47 // pred_check_branch
          %270 = sbr.rel (%p268) target = $region52
        $region51: #{tpu_custom_call.1} parent=47 // pred_region
          %271 = dma.done %s264, 512
        $region52: #{tpu_custom_call.1} parent=47 // pred_fallthru
          _
        %s272 = sand.u32 %s33, 1
        %s273 = scalar_lea.sflag [#allocation4], %s272
        %s274 = sand.u32 %s33, 1
        %s275 = smul.addr %s274, 32
        %s276 = scalar_lea.vmem [#allocation3], %s275
        %p277 = pneg %p46
        %p278 = pneg %p43
        %p279 = pneg %p67
        %p280 = pneg %p64
        %p281 = pneg %p88
        %p282 = pneg %p85
        %p283 = pneg %p109
        %p284 = pneg %p106
        %p285 = pneg %p130
        %p286 = pneg %p127
        %p287 = pneg %p151
        %p288 = pneg %p148
        %p289 = pneg %p172
        %p290 = pneg %p169
        %p291 = pneg %p198
        %p292 = pneg %p195
        %s293 = sand.u32 %s185, 1
        %s294 = scalar_lea.sflag [#allocation5], %s293
        %s295 = sand.u32 %s185, 1
        %s296 = smul.addr %s295, 32
        %s297 = scalar_lea.vmem [#allocation6], %s296
        %v298 = vld [vmem:[%s267] sm:$0xf]
        %v299 = vld [vmem:[%s267 + $0x4] sm:$0xf]
        %v300 = vld [vmem:[%s267 + $0x8] sm:$0xf]
        %v301 = vld [vmem:[%s267 + $0xc] sm:$0xf]
        %v302 = vld [vmem:[%s267 + $0x10] sm:$0xf]
        %v303 = vld [vmem:[%s267 + $0x14] sm:$0xf]
        %v304 = vld [vmem:[%s267 + $0x18] sm:$0xf]
        %v305 = vld [vmem:[%s267 + $0x1c] sm:$0xf]
        %v306 = vunpack.c.l.bf16 %v298
        %v307 = vunpack.c.l.bf16 %v299
        %v308 = vunpack.c.l.bf16 %v300
        %v309 = vunpack.c.l.bf16 %v301
        %v310 = vunpack.c.l.bf16 %v302
        %v311 = vunpack.c.l.bf16 %v303
        %v312 = vunpack.c.l.bf16 %v304
        %v313 = vunpack.c.l.bf16 %v305
        %v314 = vld [vmem:[%s1] sm:$0xff]
        %v315 = vld [vmem:[%s1 + $0x8] sm:$0xff]
        %v316 = vld [vmem:[%s1 + $0x10] sm:$0xff]
        %v317 = vld [vmem:[%s1 + $0x18] sm:$0xff]
        %v318 = vld [vmem:[%s1 + $0x20] sm:$0xff]
        %v319 = vld [vmem:[%s1 + $0x28] sm:$0xff]
        %v320 = vld [vmem:[%s1 + $0x30] sm:$0xff]
        %v321 = vld [vmem:[%s1 + $0x38] sm:$0xff]
        %v322 = vld [vmem:[%s1 + $0x40] sm:$0xff]
        %v323 = vld [vmem:[%s1 + $0x48] sm:$0xff]
        %v324 = vld [vmem:[%s1 + $0x50] sm:$0xff]
        %v325 = vld [vmem:[%s1 + $0x58] sm:$0xff]
        %v326 = vld [vmem:[%s1 + $0x60] sm:$0xff]
        %v327 = vld [vmem:[%s1 + $0x68] sm:$0xff]
        %v328 = vld [vmem:[%s1 + $0x70] sm:$0xff]
        %v329 = vld [vmem:[%s1 + $0x78] sm:$0xff]
        %s330 = sld [smem:[#allocation2]]
        %v331 = vstv %s330
        %332 = vmatprep.subr.mxu0 0.0
        %333 = vmatpush1.msra.mxu0 %v314
        %334 = vmatprep.subr.mxu0 0.0
        %335 = vmatpush1.msra.mxu0 %v315
        %336 = vmatprep.subr.mxu0 0.0
        %337 = vmatpush1.msra.mxu0 %v316
        %338 = vmatprep.subr.mxu0 0.0
        %339 = vmatpush1.msra.mxu0 %v317
        %340 = vmatprep.subr.mxu0 0.0
        %341 = vmatpush1.msra.mxu0 %v318
        %342 = vmatprep.subr.mxu0 0.0
        %343 = vmatpush1.msra.mxu0 %v319
        %344 = vmatprep.subr.mxu0 0.0
        %345 = vmatpush1.msra.mxu0 %v320
        %346 = vmatprep.subr.mxu0 0.0
        %347 = vmatpush1.msra.mxu0 %v321
        %348 = vmatprep.subr.mxu0 0.0
        %349 = vmatpush1.msra.mxu0 %v322
        %350 = vmatprep.subr.mxu0 0.0
        %351 = vmatpush1.msra.mxu0 %v323
        %352 = vmatprep.subr.mxu0 0.0
        %353 = vmatpush1.msra.mxu0 %v324
        %354 = vmatprep.subr.mxu0 0.0
        %355 = vmatpush1.msra.mxu0 %v325
        %356 = vmatprep.subr.mxu0 0.0
        %357 = vmatpush1.msra.mxu0 %v326
        %358 = vmatprep.subr.mxu0 0.0
        %359 = vmatpush1.msra.mxu0 %v327
        %360 = vmatprep.subr.mxu0 0.0
        %361 = vmatpush1.msra.mxu0 %v328
        %362 = vmatprep.subr.mxu0 0.0
        %363 = vmatpush1.msra.mxu0 %v329
        %364 = vmatprep.subr.mxu0 0.0
        %365 = vmatpush1.msra.mxu0 0.0
        %366 = vmatprep.subr.mxu0 0.0
        %367 = vmatpush1.msra.mxu0 0.0
        %368 = vmatprep.subr.mxu0 0.0
        %369 = vmatpush1.msra.mxu0 0.0
        %370 = vmatprep.subr.mxu0 0.0
        %371 = vmatpush1.msra.mxu0 0.0
        %372 = vmatprep.subr.mxu0 0.0
        %373 = vmatpush1.msra.mxu0 0.0
        %374 = vmatprep.subr.mxu0 0.0
        %375 = vmatpush1.msra.mxu0 0.0
        %376 = vmatprep.subr.mxu0 0.0
        %377 = vmatpush1.msra.mxu0 0.0
        %378 = vmatprep.subr.mxu0 0.0
        %379 = vmatpush1.msra.mxu0 0.0
        %380 = vmatprep.subr.mxu0 0.0
        %381 = vmatpush1.msra.mxu0 0.0
        %382 = vmatprep.subr.mxu0 0.0
        %383 = vmatpush1.msra.mxu0 0.0
        %384 = vmatprep.subr.mxu0 0.0
        %385 = vmatpush1.msra.mxu0 0.0
        %386 = vmatprep.subr.mxu0 0.0
        %387 = vmatpush1.msra.mxu0 0.0
        %388 = vmatprep.subr.mxu0 0.0
        %389 = vmatpush1.msra.mxu0 0.0
        %390 = vmatprep.subr.mxu0 0.0
        %391 = vmatpush1.msra.mxu0 0.0
        %392 = vmatprep.subr.mxu0 0.0
        %393 = vmatpush1.msra.mxu0 0.0
        %394 = vmatprep.subr.mxu0 0.0
        %395 = vmatpush1.msra.mxu0 0.0
        %396 = vmatprep.mubr.f32.mxu0 0.0
        %397 = vmatmul.mubr.f32.gmra.mrb[0].mxu0 %v306
        %v398 = vpop.f32.mrb[0].mxu0
        %v399 = vadd.f32 %v331, %v398
        %v400 = vpop.f32.mrb[0].mxu0
        %401 = vmatprep.mubr.f32.mxu0 0.0
        %402 = vmatmul.mubr.f32.gmra.mrb[0].mxu0 %v307
        %v403 = vpop.f32.mrb[0].mxu0
        %v404 = vadd.f32 %v331, %v403
        %v405 = vpop.f32.mrb[0].mxu0
        %406 = vmatprep.mubr.f32.mxu0 0.0
        %407 = vmatmul.mubr.f32.gmra.mrb[0].mxu0 %v308
        %v408 = vpop.f32.mrb[0].mxu0
        %v409 = vadd.f32 %v331, %v408
        %v410 = vpop.f32.mrb[0].mxu0
        %411 = vmatprep.mubr.f32.mxu0 0.0
        %412 = vmatmul.mubr.f32.gmra.mrb[0].mxu0 %v309
        %v413 = vpop.f32.mrb[0].mxu0
        %v414 = vadd.f32 %v331, %v413
        %v415 = vpop.f32.mrb[0].mxu0
        %416 = vmatprep.mubr.f32.mxu0 0.0
        %417 = vmatmul.mubr.f32.gmra.mrb[0].mxu0 %v310
        %v418 = vpop.f32.mrb[0].mxu0
        %v419 = vadd.f32 %v331, %v418
        %v420 = vpop.f32.mrb[0].mxu0
        %421 = vmatprep.mubr.f32.mxu0 0.0
        %422 = vmatmul.mubr.f32.gmra.mrb[0].mxu0 %v311
        %v423 = vpop.f32.mrb[0].mxu0
        %v424 = vadd.f32 %v331, %v423
        %v425 = vpop.f32.mrb[0].mxu0
        %426 = vmatprep.mubr.f32.mxu0 0.0
        %427 = vmatmul.mubr.f32.gmra.mrb[0].mxu0 %v312
        %v428 = vpop.f32.mrb[0].mxu0
        %v429 = vadd.f32 %v331, %v428
        %v430 = vpop.f32.mrb[0].mxu0
        %431 = vmatprep.mubr.f32.mxu0 0.0
        %432 = vmatmul.mubr.f32.gmra.mrb[0].mxu0 %v313
        %v433 = vpop.f32.mrb[0].mxu0
        %v434 = vadd.f32 %v331, %v433
        %v435 = vpop.f32.mrb[0].mxu0
        %436 = vdwg.mxu0
        %v437 = vxor.u32 %v399, 2147483648
        %v438 = vxor.u32 %v404, 2147483648
        %v439 = vxor.u32 %v409, 2147483648
        %v440 = vxor.u32 %v414, 2147483648
        %v441 = vxor.u32 %v419, 2147483648
        %v442 = vxor.u32 %v424, 2147483648
        %v443 = vxor.u32 %v429, 2147483648
        %v444 = vxor.u32 %v434, 2147483648
        %v445 = vmul.f32 %v437, 1.442695
        %v446 = vpow.pop %v445
        %v447 = vmul.f32 %v438, 1.442695
        %v448 = vpow.pop %v447
        %v449 = vmul.f32 %v439, 1.442695
        %v450 = vpow.pop %v449
        %v451 = vmul.f32 %v440, 1.442695
        %v452 = vpow.pop %v451
        %v453 = vmul.f32 %v441, 1.442695
        %v454 = vpow.pop %v453
        %v455 = vmul.f32 %v442, 1.442695
        %v456 = vpow.pop %v455
        %v457 = vmul.f32 %v443, 1.442695
        %v458 = vpow.pop %v457
        %v459 = vmul.f32 %v444, 1.442695
        %v460 = vpow.pop %v459
        %v461 = vadd.f32 %v446, 1.0
        %v462 = vadd.f32 %v448, 1.0
        %v463 = vadd.f32 %v450, 1.0
        %v464 = vadd.f32 %v452, 1.0
        %v465 = vadd.f32 %v454, 1.0
        %v466 = vadd.f32 %v456, 1.0
        %v467 = vadd.f32 %v458, 1.0
        %v468 = vadd.f32 %v460, 1.0
        %v469 = vrcp.pop %v461
        %v470 = vmul.f32 1.0, %v469
        %v471 = vrcp.pop %v462
        %v472 = vmul.f32 1.0, %v471
        %v473 = vrcp.pop %v463
        %v474 = vmul.f32 1.0, %v473
        %v475 = vrcp.pop %v464
        %v476 = vmul.f32 1.0, %v475
        %v477 = vrcp.pop %v465
        %v478 = vmul.f32 1.0, %v477
        %v479 = vrcp.pop %v466
        %v480 = vmul.f32 1.0, %v479
        %v481 = vrcp.pop %v467
        %v482 = vmul.f32 1.0, %v481
        %v483 = vrcp.pop %v468
        %v484 = vmul.f32 1.0, %v483
        %v485 = vadd.f32 %v306, %v307
        %v486 = vadd.f32 %v485, %v308
        %v487 = vadd.f32 %v486, %v309
        %v488 = vadd.f32 %v487, %v310
        %v489 = vadd.f32 %v488, %v311
        %v490 = vadd.f32 %v489, %v312
        %v491 = vadd.f32 %v490, %v313
        %v492 = vrot.slane %v491, 4
        %v493 = vadd.f32 %v491, %v492
        %v494 = vrot.slane %v493, 2
        %v495 = vadd.f32 %v493, %v494
        %v496 = vrot.slane %v495, 1
        %v497 = vadd.f32 %v495, %v496
        %v498 = vmul.f32 %v497, 0.015625
        %v499 = vld [vmem:[%s3] sm:$0xff]
        %v500 = vld [vmem:[%s3 + $0x8] sm:$0xff]
        %v501 = vld [vmem:[%s3 + $0x10] sm:$0xff]
        %v502 = vld [vmem:[%s3 + $0x18] sm:$0xff]
        %v503 = vld [vmem:[%s3 + $0x20] sm:$0xff]
        %v504 = vld [vmem:[%s3 + $0x28] sm:$0xff]
        %v505 = vld [vmem:[%s3 + $0x30] sm:$0xff]
        %v506 = vld [vmem:[%s3 + $0x38] sm:$0xff]
        %v507 = vld [vmem:[%s3 + $0x40] sm:$0xff]
        %v508 = vld [vmem:[%s3 + $0x48] sm:$0xff]
        %v509 = vld [vmem:[%s3 + $0x50] sm:$0xff]
        %v510 = vld [vmem:[%s3 + $0x58] sm:$0xff]
        %v511 = vld [vmem:[%s3 + $0x60] sm:$0xff]
        %v512 = vld [vmem:[%s3 + $0x68] sm:$0xff]
        %v513 = vld [vmem:[%s3 + $0x70] sm:$0xff]
        %v514 = vld [vmem:[%s3 + $0x78] sm:$0xff]
        %v515 = vld [vmem:[%s4] sm:$0x1]
        %516 = vmatprep.subr.mxu0 0.0
        %517 = vmatpush1.msra.mxu0 %v499
        %518 = vmatprep.subr.mxu0 0.0
        %519 = vmatpush1.msra.mxu0 %v500
        %520 = vmatprep.subr.mxu0 0.0
        %521 = vmatpush1.msra.mxu0 %v501
        %522 = vmatprep.subr.mxu0 0.0
        %523 = vmatpush1.msra.mxu0 %v502
        %524 = vmatprep.subr.mxu0 0.0
        %525 = vmatpush1.msra.mxu0 %v503
        %526 = vmatprep.subr.mxu0 0.0
        %527 = vmatpush1.msra.mxu0 %v504
        %528 = vmatprep.subr.mxu0 0.0
        %529 = vmatpush1.msra.mxu0 %v505
        %530 = vmatprep.subr.mxu0 0.0
        %531 = vmatpush1.msra.mxu0 %v506
        %532 = vmatprep.subr.mxu0 0.0
        %533 = vmatpush1.msra.mxu0 %v507
        %534 = vmatprep.subr.mxu0 0.0
        %535 = vmatpush1.msra.mxu0 %v508
        %536 = vmatprep.subr.mxu0 0.0
        %537 = vmatpush1.msra.mxu0 %v509
        %538 = vmatprep.subr.mxu0 0.0
        %539 = vmatpush1.msra.mxu0 %v510
        %540 = vmatprep.subr.mxu0 0.0
        %541 = vmatpush1.msra.mxu0 %v511
        %542 = vmatprep.subr.mxu0 0.0
        %543 = vmatpush1.msra.mxu0 %v512
        %544 = vmatprep.subr.mxu0 0.0
        %545 = vmatpush1.msra.mxu0 %v513
        %546 = vmatprep.subr.mxu0 0.0
        %547 = vmatpush1.msra.mxu0 %v514
        %548 = vmatprep.subr.mxu0 0.0
        %549 = vmatpush1.msra.mxu0 0.0
        %550 = vmatprep.subr.mxu0 0.0
        %551 = vmatpush1.msra.mxu0 0.0
        %552 = vmatprep.subr.mxu0 0.0
        %553 = vmatpush1.msra.mxu0 0.0
        %554 = vmatprep.subr.mxu0 0.0
        %555 = vmatpush1.msra.mxu0 0.0
        %556 = vmatprep.subr.mxu0 0.0
        %557 = vmatpush1.msra.mxu0 0.0
        %558 = vmatprep.subr.mxu0 0.0
        %559 = vmatpush1.msra.mxu0 0.0
        %560 = vmatprep.subr.mxu0 0.0
        %561 = vmatpush1.msra.mxu0 0.0
        %562 = vmatprep.subr.mxu0 0.0
        %563 = vmatpush1.msra.mxu0 0.0
        %564 = vmatprep.subr.mxu0 0.0
        %565 = vmatpush1.msra.mxu0 0.0
        %566 = vmatprep.subr.mxu0 0.0
        %567 = vmatpush1.msra.mxu0 0.0
        %568 = vmatprep.subr.mxu0 0.0
        %569 = vmatpush1.msra.mxu0 0.0
        %570 = vmatprep.subr.mxu0 0.0
        %571 = vmatpush1.msra.mxu0 0.0
        %572 = vmatprep.subr.mxu0 0.0
        %573 = vmatpush1.msra.mxu0 0.0
        %574 = vmatprep.subr.mxu0 0.0
        %575 = vmatpush1.msra.mxu0 0.0
        %576 = vmatprep.subr.mxu0 0.0
        %577 = vmatpush1.msra.mxu0 0.0
        %578 = vmatprep.subr.mxu0 0.0
        %579 = vmatpush1.msra.mxu0 0.0
        %580 = vmatprep.mubr.f32.mxu0 0.0
        %581 = vmatmul.mubr.f32.gmra.mrb[0].mxu0 %v498
        %v582 = vpop.f32.mrb[0].mxu0
        %v583 = vadd.f32 %v515, %v582
        %v584 = vpop.f32.mrb[0].mxu0
        %585 = vdwg.mxu0
        %v586 = vmax.f32 %v583, 0.0
        %v587 = vld [vmem:[%s5] sm:$0xff]
        %v588 = vld [vmem:[%s5 + $0x8] sm:$0xff]
        %v589 = vld [vmem:[%s6] sm:$0x1]
        %vm590 = vcmask 130048
        %v592 = vsel %vm590, %v586, 0
        %594 = vmatprep.subr.mxu0 0.0
        %595 = vmatpush1.msra.mxu0 %v587
        %596 = vmatprep.subr.mxu0 0.0
        %597 = vmatpush1.msra.mxu0 %v588
        %598 = vmatprep.subr.mxu0 0.0
        %599 = vmatpush1.msra.mxu0 0.0
        %600 = vmatprep.subr.mxu0 0.0
        %601 = vmatpush1.msra.mxu0 0.0
        %602 = vmatprep.subr.mxu0 0.0
        %603 = vmatpush1.msra.mxu0 0.0
        %604 = vmatprep.subr.mxu0 0.0
        %605 = vmatpush1.msra.mxu0 0.0
        %606 = vmatprep.subr.mxu0 0.0
        %607 = vmatpush1.msra.mxu0 0.0
        %608 = vmatprep.subr.mxu0 0.0
        %609 = vmatpush1.msra.mxu0 0.0
        %610 = vmatprep.subr.mxu0 0.0
        %611 = vmatpush1.msra.mxu0 0.0
        %612 = vmatprep.subr.mxu0 0.0
        %613 = vmatpush1.msra.mxu0 0.0
        %614 = vmatprep.subr.mxu0 0.0
        %615 = vmatpush1.msra.mxu0 0.0
        %616 = vmatprep.subr.mxu0 0.0
        %617 = vmatpush1.msra.mxu0 0.0
        %618 = vmatprep.subr.mxu0 0.0
        %619 = vmatpush1.msra.mxu0 0.0
        %620 = vmatprep.subr.mxu0 0.0
        %621 = vmatpush1.msra.mxu0 0.0
        %622 = vmatprep.subr.mxu0 0.0
        %623 = vmatpush1.msra.mxu0 0.0
        %624 = vmatprep.subr.mxu0 0.0
        %625 = vmatpush1.msra.mxu0 0.0
        %626 = vmatprep.subr.mxu0 0.0
        %627 = vmatpush1.msra.mxu0 0.0
        %628 = vmatprep.subr.mxu0 0.0
        %629 = vmatpush1.msra.mxu0 0.0
        %630 = vmatprep.subr.mxu0 0.0
        %631 = vmatpush1.msra.mxu0 0.0
        %632 = vmatprep.subr.mxu0 0.0
        %633 = vmatpush1.msra.mxu0 0.0
        %634 = vmatprep.subr.mxu0 0.0
        %635 = vmatpush1.msra.mxu0 0.0
        %636 = vmatprep.subr.mxu0 0.0
        %637 = vmatpush1.msra.mxu0 0.0
        %638 = vmatprep.subr.mxu0 0.0
        %639 = vmatpush1.msra.mxu0 0.0
        %640 = vmatprep.subr.mxu0 0.0
        %641 = vmatpush1.msra.mxu0 0.0
        %642 = vmatprep.subr.mxu0 0.0
        %643 = vmatpush1.msra.mxu0 0.0
        %644 = vmatprep.subr.mxu0 0.0
        %645 = vmatpush1.msra.mxu0 0.0
        %646 = vmatprep.subr.mxu0 0.0
        %647 = vmatpush1.msra.mxu0 0.0
        %648 = vmatprep.subr.mxu0 0.0
        %649 = vmatpush1.msra.mxu0 0.0
        %650 = vmatprep.subr.mxu0 0.0
        %651 = vmatpush1.msra.mxu0 0.0
        %652 = vmatprep.subr.mxu0 0.0
        %653 = vmatpush1.msra.mxu0 0.0
        %654 = vmatprep.subr.mxu0 0.0
        %655 = vmatpush1.msra.mxu0 0.0
        %656 = vmatprep.subr.mxu0 0.0
        %657 = vmatpush1.msra.mxu0 0.0
        %658 = vmatprep.mubr.f32.mxu0 0.0
        %659 = vmatmul.mubr.f32.gmra.mrb[0].mxu0 %v592
        %v660 = vpop.f32.mrb[0].mxu0
        %v661 = vadd.f32 %v589, %v660
        %v662 = vpop.f32.mrb[0].mxu0
        %663 = vdwg.mxu0
        %v664 = vxor.u32 %v661, 2147483648
        %v665 = vmul.f32 %v664, 1.442695
        %v666 = vpow.pop %v665
        %v667 = vadd.f32 %v666, 1.0
        %v668 = vrcp.pop %v667
        %v669 = vmul.f32 1.0, %v668
        %v670 = vlaneseq
        %v671 = vshrl.u32 %v670, 7
        %v672 = vsub.s32 0, %v671
        %v673 = vrot.slane %v669, %v672
        %v674 = vadd.f32 %v470, %v673
        %v675 = vadd.f32 %v472, %v673
        %v676 = vadd.f32 %v474, %v673
        %v677 = vadd.f32 %v476, %v673
        %v678 = vadd.f32 %v478, %v673
        %v679 = vadd.f32 %v480, %v673
        %v680 = vadd.f32 %v482, %v673
        %v681 = vadd.f32 %v484, %v673
        %v682 = vmul.f32 %v306, %v674
        %v683 = vmul.f32 %v307, %v675
        %v684 = vmul.f32 %v308, %v676
        %v685 = vmul.f32 %v309, %v677
        %v686 = vmul.f32 %v310, %v678
        %v687 = vmul.f32 %v311, %v679
        %v688 = vmul.f32 %v312, %v680
        %v689 = vmul.f32 %v313, %v681
        %v690 = vpack.c.bf16 %v683, %v682
        %v691 = vpack.c.bf16 %v685, %v684
        %v692 = vpack.c.bf16 %v687, %v686
        %v693 = vpack.c.bf16 %v689, %v688
        %v698 = vunpack.c.l.b16 %v690
        %v699 = vunpack.c.h.b16 %v690
        %v700 = vunpack.c.l.b16 %v691
        %v701 = vunpack.c.h.b16 %v691
        %v702 = vunpack.c.l.b16 %v692
        %v703 = vunpack.c.h.b16 %v692
        %v704 = vunpack.c.l.b16 %v693
        %v705 = vunpack.c.h.b16 %v693
        %v706 = vpack.c.b16 %v698, %v698
        %v707 = vpack.c.b16 %v699, %v699
        %v708 = vpack.c.b16 %v700, %v700
        %v709 = vpack.c.b16 %v701, %v701
        %v710 = vpack.c.b16 %v702, %v702
        %v711 = vpack.c.b16 %v703, %v703
        %v712 = vpack.c.b16 %v704, %v704
        %v713 = vpack.c.b16 %v705, %v705
        %722 = vst [vmem:[%s297] sm:$0xf] %v706
        %723 = vst [vmem:[%s297 + $0x4] sm:$0xf] %v707
        %724 = vst [vmem:[%s297 + $0x8] sm:$0xf] %v708
        %725 = vst [vmem:[%s297 + $0xc] sm:$0xf] %v709
        %726 = vst [vmem:[%s297 + $0x10] sm:$0xf] %v710
        %727 = vst [vmem:[%s297 + $0x14] sm:$0xf] %v711
        %728 = vst [vmem:[%s297 + $0x18] sm:$0xf] %v712
        %729 = vst [vmem:[%s297 + $0x1c] sm:$0xf] %v713
        %s730 = sand.u32 %s185, 1
        %s731 = scalar_lea.sflag [#allocation5], %s730
        %s732 = sand.u32 %s185, 1
        %s733 = smul.addr %s732, 32
        %s734 = scalar_lea.vmem [#allocation6], %s733
        // Predicated region
        $region53: #{tpu_custom_call.1} parent=47 // pred_check
          %p735 = pneg %p195
        $region54: #{tpu_custom_call.1} parent=47 // pred_check_branch
          %737 = sbr.rel (%p735) target = $region56
        $region55: #{tpu_custom_call.1} parent=47 // pred_region
          %s739 = ssub.s32 512, 512
          %740 = vsyncadd %s731, %s739
          %s741 = smul.addr %s25, 8
          %s742 = smul.addr %s741, 64
          %s743 = scalar_lea.hbm %s7, %s742
          %s744 = sshll.u32 %s734, 4
          %s745 = int_to_ptr.vmem [resolvable:$true] %s744
          %750 = dma.vmem_to_hbm [thread:$0]  %s745, 512, %s743, %s731, 64, 64, 4
        $region56: #{tpu_custom_call.1} parent=47 // pred_fallthru
          _
      $region48: #{tpu_custom_call.1} parent=5 // pred_fallthru
        _
      %p751 = scmp.le.s32.totalorder 2, %s20
      // Predicated region
      $region57: #{tpu_custom_call.1} parent=5 // pred_check
        %p752 = pneg %p751
      $region58: #{tpu_custom_call.1} parent=5 // pred_check_branch
        %754 = sbr.rel (%p752) target = $region60
      $region59: #{tpu_custom_call.1} parent=5 // pred_region
        %s755 = ssub.s32 %s20, 2
        // Predicated region
        $region61: #{tpu_custom_call.1} parent=59 // pred_check
          %p756 = pneg %p201
        $region62: #{tpu_custom_call.1} parent=59 // pred_check_branch
          %758 = sbr.rel (%p756) target = $region64
        $region63: #{tpu_custom_call.1} parent=59 // pred_region
          %s759 = sand.u32 %s186, 1
          %s760 = scalar_lea.sflag [#allocation5], %s759
          %s761 = sand.u32 %s186, 1
          %s762 = smul.addr %s761, 32
          %s763 = scalar_lea.vmem [#allocation6], %s762
          %764 = dma.done %s760, 512
        $region64: #{tpu_custom_call.1} parent=59 // pred_fallthru
          _
      $region60: #{tpu_custom_call.1} parent=5 // pred_fallthru
        _
    $region6: #{tpu_custom_call.1} parent=1 // loop_footer
      %s24 = sadd.s32 1, %s20
    $region7: #{tpu_custom_call.1} parent=1 // loop_footer_branch
      %19 = sbr.rel target = $region3
    $region8: #{tpu_custom_call.1} parent=1 // loop_exit
      _
    %765 = vsyncpa [#allocation4], 1
    %s766 = scalar_lea.sflag [#allocation4], 1
    %767 = vsyncpa %s766, 1
    %768 = vsyncpa [#allocation5], 1
    %s769 = scalar_lea.sflag [#allocation5], 1
    %770 = vsyncpa %s769, 1

</llo_original>
